<compile_context>
chip_gen: v5e
topology: v5e:2x2
jax: 0.10.0
libtpu: 0.0.40
codegen_flags: <defaults>
</compile_context>

<pallas_src>
import jax
import jax.numpy as jnp
import numpy as np
from jax.experimental import pallas as pl
from jax.experimental.pallas import tpu as pltpu

ALPHA = 0.2  # LeakyReLU negative slope


def gat_kernel(xf_ref, adj_ref, w_ref, asrc_ref, adst_ref, out_ref,
               projf_ref, src_ref, dstT_ref):
    # xf_ref:   (1, N,  F_in)   full node set for this batch element
    # adj_ref:  (1, TQ, N)      adjacency rows for the query tile (original dtype)
    # w_ref:    (F_in, H*F)     projection weight (transposed Linear weight)
    # asrc_ref, adst_ref: (H*F, H) block-diagonal attention params
    # out_ref:  (1, TQ, H*F)
    # projf_ref:(N, H*F) f32    scratch: cached projection of all nodes (per batch elem)
    # src_ref:  (N, H)   f32    scratch: cached <x_j, a_src_h> for all nodes/heads
    # dstT_ref: (H, N)   f32    scratch: cached <x_j, a_dst_h>, transposed once per batch
    i = pl.program_id(1)
    tq = adj_ref.shape[1]
    H = asrc_ref.shape[1]
    HF = w_ref.shape[1]
    F = HF // H

    # Per-batch-element precompute: only on the first query tile of each batch element.
    @pl.when(i == 0)
    def _():
        pf = jnp.dot(xf_ref[0], w_ref[...], preferred_element_type=jnp.float32)   # (N, HF)
        projf_ref[...] = pf
        src_ref[...] = jnp.dot(pf, asrc_ref[...], preferred_element_type=jnp.float32)  # (N, H)
        dst_all = jnp.dot(pf, adst_ref[...], preferred_element_type=jnp.float32)       # (N, H)
        dstT_ref[...] = dst_all.T                                                      # (H, N)

    row0 = pl.multiple_of(i * tq, tq)
    proj_f = projf_ref[...]                        # (N, HF)
    src_q = src_ref[pl.ds(row0, tq), :]            # (TQ, H)  query-tile src terms
    dst_t = dstT_ref[...]                          # (H, N)
    adj = adj_ref[0]                               # (TQ, N)

    # Adjacency mask bias, computed once per tile and reused by every head.
    neg_inf = jnp.float32(-jnp.inf)
    mask_bias = jnp.where(adj == 0, neg_inf, jnp.float32(0.0))          # (TQ, N)

    out_parts = []
    for h in range(H):  # H is small and static; Python unroll gives LLO full visibility
        # e_ij = leaky_relu( <x_i, a_src_h> + <x_j, a_dst_h> ) + mask
        logits = src_q[:, h:h + 1] + dst_t[h:h + 1, :]                  # (TQ, N)
        logits = jnp.maximum(logits, ALPHA * logits)                    # LeakyReLU (one vmax)
        logits = logits + mask_bias                                     # non-edges -> -inf

        # Softmax over neighbors, normalization deferred past the aggregation matmul.
        m = jnp.max(logits, axis=-1, keepdims=True)
        e = jnp.exp(logits - m)                                         # (TQ, N)
        s = jnp.sum(e, axis=-1, keepdims=True)                          # (TQ, 1)
        # TODO(synk): dropout on attention weights omitted (dropout=0.0 / eval semantics)

        ph = proj_f[:, h * F:(h + 1) * F]                               # (N, F)
        agg = jnp.dot(e, ph, preferred_element_type=jnp.float32)        # (TQ, F) on MXU
        out_parts.append(agg * (1.0 / s))                               # row-scale, not N^2 divides

    # Single lane-dense store of all heads (concat=True semantics).
    # TODO(synk): concat=False branch (mean over heads) not implemented; module default is concat=True.
    out = jnp.concatenate(out_parts, axis=-1)                           # (TQ, H*F)
    out_ref[0] = out.astype(out_ref.dtype)


def _block_diag(a):
    """(H, F) attention vector per head -> (H*F, H) block-diagonal matrix."""
    H, F = a.shape
    eye = jnp.eye(H, dtype=a.dtype)                                     # (H, H)
    return (a[:, :, None] * eye[:, None, :]).reshape(H * F, H)


def _default_tq(n):
    # Row tile that (a) divides N, (b) is a multiple of 8 (f32 sublane tiling),
    # (c) yields >= 2 tiles so per-batch precompute is actually amortized, while keeping
    # the double-buffered (TQ, N) adj slab far under the v7x VMEM budget.
    for cand in (256, 128, 64, 32, 16, 8):
        if n % cand == 0 and n // cand >= 2:
            return cand
    return n


def gat_forward(x, adj, w_t, a_src, a_dst, tq=None):
    B, N, Fin = x.shape
    H, Fout = a_src.shape
    HF = H * Fout

    if tq is None:
        tq = _default_tq(N)
    assert N % tq == 0, "row tile must divide N"

    a_src_bd = _block_diag(a_src)          # (H*F, H)
    a_dst_bd = _block_diag(a_dst)          # (H*F, H)

    grid = (B, N // tq)
    return pl.pallas_call(
        gat_kernel,
        out_shape=jax.ShapeDtypeStruct((B, N, HF), jnp.float32),
        grid_spec=pltpu.PrefetchScalarGridSpec(
            num_scalar_prefetch=0,
            grid=grid,
            in_specs=[
                pl.BlockSpec((1, N, Fin), lambda b, i: (b, 0, 0)),    # full x for this batch elem
                pl.BlockSpec((1, tq, N), lambda b, i: (b, i, 0)),     # adj row tile
                pl.BlockSpec((Fin, HF), lambda b, i: (0, 0)),         # projection weight
                pl.BlockSpec((HF, H), lambda b, i: (0, 0)),           # a_src block-diag
                pl.BlockSpec((HF, H), lambda b, i: (0, 0)),           # a_dst block-diag
            ],
            out_specs=pl.BlockSpec((1, tq, HF), lambda b, i: (b, i, 0)),
            scratch_shapes=[
                pltpu.VMEM((N, HF), jnp.float32),   # cached projection of all nodes
                pltpu.VMEM((N, H), jnp.float32),    # cached src terms
                pltpu.VMEM((H, N), jnp.float32),    # cached dst terms (transposed)
            ],
        ),
        compiler_params=pltpu.CompilerParams(
            # batch axis feeds megacore; tile axis is arbitrary so the per-batch VMEM
            # caches (filled at i == 0) are valid for every subsequent tile.
            dimension_semantics=("parallel", "arbitrary")),
    )(x, adj, w_t, a_src_bd, a_dst_bd)


def gat_reference(x, adj, w_t, a_src, a_dst):
    """Pure-JAX reference mirroring the PyTorch forward (concat=True, dropout=0)."""
    B, N, Fin = x.shape
    H, Fout = a_src.shape
    proj = jnp.einsum('bnf,fk->bnk', x, w_t).reshape(B, N, H, Fout)   # (B,N,H,Fout)
    src = jnp.einsum('bnhf,hf->bhn', proj, a_src)                     # (B,H,N)
    dst = jnp.einsum('bnhf,hf->bhn', proj, a_dst)                     # (B,H,N)
    logits = src[:, :, :, None] + dst[:, :, None, :]                  # (B,H,N,N)
    logits = jnp.where(logits > 0, logits, ALPHA * logits)
    mask = adj[:, None, :, :] == 0
    logits = jnp.where(mask, -jnp.inf, logits)
    attn = jax.nn.softmax(logits, axis=-1)
    h_prime = jnp.einsum('bhij,bjhf->bihf', attn, proj)               # (B,N,H,Fout)
    return h_prime.reshape(B, N, H * Fout)


if __name__ == "__main__":
    B, N, Fin, H, Fout = 2, 64, 16, 4, 8

    key = jax.random.PRNGKey(0)
    k_x, k_adj, k_w, k_a = jax.random.split(key, 4)

    x = jax.random.normal(k_x, (B, N, Fin), dtype=jnp.float32)

    # Random 0/1 adjacency with guaranteed self-loops (avoids all -inf softmax rows).
    adj = jax.random.bernoulli(k_adj, 0.4, (B, N, N)).astype(jnp.float32)
    adj = jnp.clip(adj + jnp.eye(N, dtype=jnp.float32)[None], 0.0, 1.0)

    # nn.Linear(in_features, num_heads*out_features, bias=False): weight (H*Fout, Fin)
    lim_w = float(np.sqrt(6.0 / (Fin + H * Fout)))
    W = jax.random.uniform(k_w, (H * Fout, Fin), minval=-lim_w, maxval=lim_w,
                           dtype=jnp.float32)
    w_t = W.T  # (Fin, H*Fout), so x @ w_t == x @ W.T

    # attention parameter (H, 2*Fout), xavier_uniform with gain=1.414
    lim_a = float(1.414 * np.sqrt(6.0 / (H + 2 * Fout)))
    attention = jax.random.uniform(k_a, (H, 2 * Fout), minval=-lim_a, maxval=lim_a,
                                   dtype=jnp.float32)
    a_src = attention[:, :Fout]
    a_dst = attention[:, Fout:]

    out = gat_forward(x, adj, w_t, a_src, a_dst, tq=32)
    out = jax.block_until_ready(out)

    ref = gat_reference(x, adj, w_t, a_src, a_dst)
    np.testing.assert_allclose(np.asarray(out), np.asarray(ref), rtol=1e-4, atol=1e-4)

    print("KERNEL_OK")
</pallas_src>

<mosaic_0001>
module attributes {stable_mosaic.version = 11 : i64} {
  func.func @gat_kernel(%arg0: i32, %arg1: i32, %arg2: memref<1x64x16xf32, #tpu.memory_space<vmem>>, %arg3: memref<1x32x64xf32, #tpu.memory_space<vmem>>, %arg4: memref<16x32xf32, #tpu.memory_space<vmem>>, %arg5: memref<32x4xf32, #tpu.memory_space<vmem>>, %arg6: memref<32x4xf32, #tpu.memory_space<vmem>>, %arg7: memref<1x32x32xf32, #tpu.memory_space<vmem>>, %arg8: memref<64x32xf32, #tpu.memory_space<vmem>>, %arg9: memref<64x4xf32, #tpu.memory_space<vmem>>, %arg10: memref<4x64xf32, #tpu.memory_space<vmem>>) attributes {dimension_semantics = [#tpu.dimension_semantics<parallel>, #tpu.dimension_semantics<arbitrary>], iteration_bounds = array<i64: 2, 2>, scalar_prefetch = 0 : i64, scratch_operands = 3 : i64, tpu.core_type = #tpu.core_type<tc>, window_params = [{transform_indices = @transform_0, window_bounds = array<i64: 1, 64, 16>}, {transform_indices = @transform_1, window_bounds = array<i64: 1, 32, 64>}, {pipeline_mode = #tpu.pipeline_mode<synchronous>, transform_indices = @transform_2, window_bounds = array<i64: 16, 32>}, {pipeline_mode = #tpu.pipeline_mode<synchronous>, transform_indices = @transform_3, window_bounds = array<i64: 32, 4>}, {pipeline_mode = #tpu.pipeline_mode<synchronous>, transform_indices = @transform_4, window_bounds = array<i64: 32, 4>}, {transform_indices = @transform_5, window_bounds = array<i64: 1, 32, 32>}]} {
    %c0_i32 = arith.constant 0 : i32
    %0 = arith.cmpi eq, %arg1, %c0_i32 : i32
    %1 = arith.extui %0 : i1 to i32
    %c0_i32_0 = arith.constant 0 : i32
    %2 = arith.cmpi ne, %1, %c0_i32_0 : i32
    scf.if %2 {
      %c0_33 = arith.constant 0 : index
      %c0_34 = arith.constant 0 : index
      %c0_35 = arith.constant 0 : index
      %108 = vector.load %arg2[%c0_33, %c0_34, %c0_35] : memref<1x64x16xf32, #tpu.memory_space<vmem>>, vector<1x64x16xf32>
      %109 = vector.shape_cast %108 : vector<1x64x16xf32> to vector<64x16xf32>
      %c0_36 = arith.constant 0 : index
      %c0_37 = arith.constant 0 : index
      %110 = vector.load %arg4[%c0_36, %c0_37] : memref<16x32xf32, #tpu.memory_space<vmem>>, vector<16x32xf32>
      %cst_38 = arith.constant dense<0.000000e+00> : vector<64x32xf32>
      %111 = tpu.matmul %109, %110, %cst_38 {dimension_numbers = #tpu.dot_dimension_numbers<[1], [0], [0], [1], [0, 0, 1, 1], [], []>} : vector<64x16xf32>, vector<16x32xf32>, vector<64x32xf32> -> vector<64x32xf32>
      %c0_39 = arith.constant 0 : index
      %c0_40 = arith.constant 0 : index
      %112 = vector.load %arg8[%c0_39, %c0_40] : memref<64x32xf32, #tpu.memory_space<vmem>>, vector<64x32xf32>
      tpu.vector_store %arg8[%c0_39, %c0_40], %111 {strides = array<i32>} : memref<64x32xf32, #tpu.memory_space<vmem>>, vector<64x32xf32>,
      %c0_41 = arith.constant 0 : index
      %c0_42 = arith.constant 0 : index
      %113 = vector.load %arg5[%c0_41, %c0_42] : memref<32x4xf32, #tpu.memory_space<vmem>>, vector<32x4xf32>
      %cst_43 = arith.constant dense<0.000000e+00> : vector<64x4xf32>
      %114 = tpu.matmul %111, %113, %cst_43 {dimension_numbers = #tpu.dot_dimension_numbers<[1], [0], [0], [1], [0, 0, 1, 1], [], []>} : vector<64x32xf32>, vector<32x4xf32>, vector<64x4xf32> -> vector<64x4xf32>
      %c0_44 = arith.constant 0 : index
      %c0_45 = arith.constant 0 : index
      %115 = vector.load %arg9[%c0_44, %c0_45] : memref<64x4xf32, #tpu.memory_space<vmem>>, vector<64x4xf32>
      tpu.vector_store %arg9[%c0_44, %c0_45], %114 {strides = array<i32>} : memref<64x4xf32, #tpu.memory_space<vmem>>, vector<64x4xf32>,
      %c0_46 = arith.constant 0 : index
      %c0_47 = arith.constant 0 : index
      %116 = vector.load %arg6[%c0_46, %c0_47] : memref<32x4xf32, #tpu.memory_space<vmem>>, vector<32x4xf32>
      %cst_48 = arith.constant dense<0.000000e+00> : vector<64x4xf32>
      %117 = tpu.matmul %111, %116, %cst_48 {dimension_numbers = #tpu.dot_dimension_numbers<[1], [0], [0], [1], [0, 0, 1, 1], [], []>} : vector<64x32xf32>, vector<32x4xf32>, vector<64x4xf32> -> vector<64x4xf32>
      %118 = tpu.transpose %117, [1, 0] : vector<64x4xf32> -> vector<4x64xf32>
      %c0_49 = arith.constant 0 : index
      %c0_50 = arith.constant 0 : index
      %119 = vector.load %arg10[%c0_49, %c0_50] : memref<4x64xf32, #tpu.memory_space<vmem>>, vector<4x64xf32>
      tpu.vector_store %arg10[%c0_49, %c0_50], %118 {strides = array<i32>} : memref<4x64xf32, #tpu.memory_space<vmem>>, vector<4x64xf32>,
    } else {
    }
    %c32_i32 = arith.constant 32 : i32
    %3 = arith.muli %arg1, %c32_i32 : i32
    %4 = tpu.assume_multiple %3, 32 : i32
    %c0 = arith.constant 0 : index
    %c0_1 = arith.constant 0 : index
    %5 = vector.load %arg8[%c0, %c0_1] : memref<64x32xf32, #tpu.memory_space<vmem>>, vector<64x32xf32>
    %6 = arith.index_cast %4 : i32 to index
    %c0_2 = arith.constant 0 : index
    %7 = vector.load %arg9[%6, %c0_2] : memref<64x4xf32, #tpu.memory_space<vmem>>, vector<32x4xf32>
    %c0_3 = arith.constant 0 : index
    %c0_4 = arith.constant 0 : index
    %8 = vector.load %arg10[%c0_3, %c0_4] : memref<4x64xf32, #tpu.memory_space<vmem>>, vector<4x64xf32>
    %c0_5 = arith.constant 0 : index
    %c0_6 = arith.constant 0 : index
    %c0_7 = arith.constant 0 : index
    %9 = vector.load %arg3[%c0_5, %c0_6, %c0_7] : memref<1x32x64xf32, #tpu.memory_space<vmem>>, vector<1x32x64xf32>
    %10 = vector.shape_cast %9 : vector<1x32x64xf32> to vector<32x64xf32>
    %cst = arith.constant 0.000000e+00 : f32
    %11 = vector.broadcast %cst : f32 to vector<32x64xf32>
    %12 = arith.cmpf oeq, %10, %11 : vector<32x64xf32>
    %cst_8 = arith.constant 0xFF800000 : f32
    %cst_9 = arith.constant 0.000000e+00 : f32
    %13 = vector.broadcast %cst_8 : f32 to vector<32x64xf32>
    %14 = vector.broadcast %cst_9 : f32 to vector<32x64xf32>
    %15 = arith.select %12, %13, %14 : vector<32x64xi1>, vector<32x64xf32>
    %16 = vector.extract_strided_slice %7 {offsets = [0, 0], sizes = [32, 1], strides = [1, 1]} : vector<32x4xf32> to vector<32x1xf32>
    %17 = vector.extract_strided_slice %8 {offsets = [0, 0], sizes = [1, 64], strides = [1, 1]} : vector<4x64xf32> to vector<1x64xf32>
    %18 = vector.broadcast %16 : vector<32x1xf32> to vector<32x64xf32>
    %19 = vector.broadcast %17 : vector<1x64xf32> to vector<32x64xf32>
    %20 = arith.addf %18, %19 : vector<32x64xf32>
    %cst_10 = arith.constant 2.000000e-01 : f32
    %21 = vector.broadcast %cst_10 : f32 to vector<32x64xf32>
    %22 = arith.mulf %21, %20 : vector<32x64xf32>
    %23 = arith.maximumf %20, %22 : vector<32x64xf32>
    %24 = arith.addf %23, %15 : vector<32x64xf32>
    %cst_11 = arith.constant dense<0xFF800000> : vector<32xf32>
    %25 = vector.multi_reduction <maximumf>, %24, %cst_11 [1] : vector<32x64xf32> to vector<32xf32>
    %26 = vector.shape_cast %25 : vector<32xf32> to vector<32x1xf32>
    %27 = vector.broadcast %26 : vector<32x1xf32> to vector<32x64xf32>
    %28 = arith.subf %24, %27 : vector<32x64xf32>
    %29 = math.exp %28 : vector<32x64xf32>
    %cst_12 = arith.constant dense<0.000000e+00> : vector<32xf32>
    %30 = vector.multi_reduction <add>, %29, %cst_12 [1] : vector<32x64xf32> to vector<32xf32>
    %31 = vector.shape_cast %30 : vector<32xf32> to vector<32x1xf32>
    %32 = vector.extract_strided_slice %5 {offsets = [0, 0], sizes = [64, 8], strides = [1, 1]} : vector<64x32xf32> to vector<64x8xf32>
    %cst_13 = arith.constant dense<0.000000e+00> : vector<32x8xf32>
    %33 = tpu.matmul %29, %32, %cst_13 {dimension_numbers = #tpu.dot_dimension_numbers<[1], [0], [0], [1], [0, 0, 1, 1], [], []>} : vector<32x64xf32>, vector<64x8xf32>, vector<32x8xf32> -> vector<32x8xf32>
    %cst_14 = arith.constant 1.000000e+00 : f32
    %34 = vector.broadcast %cst_14 : f32 to vector<32x1xf32>
    %35 = arith.divf %34, %31 : vector<32x1xf32>
    %36 = vector.broadcast %35 : vector<32x1xf32> to vector<32x8xf32>
    %37 = arith.mulf %33, %36 : vector<32x8xf32>
    %38 = vector.extract_strided_slice %7 {offsets = [0, 1], sizes = [32, 1], strides = [1, 1]} : vector<32x4xf32> to vector<32x1xf32>
    %39 = vector.extract_strided_slice %8 {offsets = [1, 0], sizes = [1, 64], strides = [1, 1]} : vector<4x64xf32> to vector<1x64xf32>
    %40 = vector.broadcast %38 : vector<32x1xf32> to vector<32x64xf32>
    %41 = vector.broadcast %39 : vector<1x64xf32> to vector<32x64xf32>
    %42 = arith.addf %40, %41 : vector<32x64xf32>
    %cst_15 = arith.constant 2.000000e-01 : f32
    %43 = vector.broadcast %cst_15 : f32 to vector<32x64xf32>
    %44 = arith.mulf %43, %42 : vector<32x64xf32>
    %45 = arith.maximumf %42, %44 : vector<32x64xf32>
    %46 = arith.addf %45, %15 : vector<32x64xf32>
    %cst_16 = arith.constant dense<0xFF800000> : vector<32xf32>
    %47 = vector.multi_reduction <maximumf>, %46, %cst_16 [1] : vector<32x64xf32> to vector<32xf32>
    %48 = vector.shape_cast %47 : vector<32xf32> to vector<32x1xf32>
    %49 = vector.broadcast %48 : vector<32x1xf32> to vector<32x64xf32>
    %50 = arith.subf %46, %49 : vector<32x64xf32>
    %51 = math.exp %50 : vector<32x64xf32>
    %cst_17 = arith.constant dense<0.000000e+00> : vector<32xf32>
    %52 = vector.multi_reduction <add>, %51, %cst_17 [1] : vector<32x64xf32> to vector<32xf32>
    %53 = vector.shape_cast %52 : vector<32xf32> to vector<32x1xf32>
    %54 = vector.extract_strided_slice %5 {offsets = [0, 8], sizes = [64, 8], strides = [1, 1]} : vector<64x32xf32> to vector<64x8xf32>
    %cst_18 = arith.constant dense<0.000000e+00> : vector<32x8xf32>
    %55 = tpu.matmul %51, %54, %cst_18 {dimension_numbers = #tpu.dot_dimension_numbers<[1], [0], [0], [1], [0, 0, 1, 1], [], []>} : vector<32x64xf32>, vector<64x8xf32>, vector<32x8xf32> -> vector<32x8xf32>
    %cst_19 = arith.constant 1.000000e+00 : f32
    %56 = vector.broadcast %cst_19 : f32 to vector<32x1xf32>
    %57 = arith.divf %56, %53 : vector<32x1xf32>
    %58 = vector.broadcast %57 : vector<32x1xf32> to vector<32x8xf32>
    %59 = arith.mulf %55, %58 : vector<32x8xf32>
    %60 = vector.extract_strided_slice %7 {offsets = [0, 2], sizes = [32, 1], strides = [1, 1]} : vector<32x4xf32> to vector<32x1xf32>
    %61 = vector.extract_strided_slice %8 {offsets = [2, 0], sizes = [1, 64], strides = [1, 1]} : vector<4x64xf32> to vector<1x64xf32>
    %62 = vector.broadcast %60 : vector<32x1xf32> to vector<32x64xf32>
    %63 = vector.broadcast %61 : vector<1x64xf32> to vector<32x64xf32>
    %64 = arith.addf %62, %63 : vector<32x64xf32>
    %cst_20 = arith.constant 2.000000e-01 : f32
    %65 = vector.broadcast %cst_20 : f32 to vector<32x64xf32>
    %66 = arith.mulf %65, %64 : vector<32x64xf32>
    %67 = arith.maximumf %64, %66 : vector<32x64xf32>
    %68 = arith.addf %67, %15 : vector<32x64xf32>
    %cst_21 = arith.constant dense<0xFF800000> : vector<32xf32>
    %69 = vector.multi_reduction <maximumf>, %68, %cst_21 [1] : vector<32x64xf32> to vector<32xf32>
    %70 = vector.shape_cast %69 : vector<32xf32> to vector<32x1xf32>
    %71 = vector.broadcast %70 : vector<32x1xf32> to vector<32x64xf32>
    %72 = arith.subf %68, %71 : vector<32x64xf32>
    %73 = math.exp %72 : vector<32x64xf32>
    %cst_22 = arith.constant dense<0.000000e+00> : vector<32xf32>
    %74 = vector.multi_reduction <add>, %73, %cst_22 [1] : vector<32x64xf32> to vector<32xf32>
    %75 = vector.shape_cast %74 : vector<32xf32> to vector<32x1xf32>
    %76 = vector.extract_strided_slice %5 {offsets = [0, 16], sizes = [64, 8], strides = [1, 1]} : vector<64x32xf32> to vector<64x8xf32>
    %cst_23 = arith.constant dense<0.000000e+00> : vector<32x8xf32>
    %77 = tpu.matmul %73, %76, %cst_23 {dimension_numbers = #tpu.dot_dimension_numbers<[1], [0], [0], [1], [0, 0, 1, 1], [], []>} : vector<32x64xf32>, vector<64x8xf32>, vector<32x8xf32> -> vector<32x8xf32>
    %cst_24 = arith.constant 1.000000e+00 : f32
    %78 = vector.broadcast %cst_24 : f32 to vector<32x1xf32>
    %79 = arith.divf %78, %75 : vector<32x1xf32>
    %80 = vector.broadcast %79 : vector<32x1xf32> to vector<32x8xf32>
    %81 = arith.mulf %77, %80 : vector<32x8xf32>
    %82 = vector.extract_strided_slice %7 {offsets = [0, 3], sizes = [32, 1], strides = [1, 1]} : vector<32x4xf32> to vector<32x1xf32>
    %83 = vector.extract_strided_slice %8 {offsets = [3, 0], sizes = [1, 64], strides = [1, 1]} : vector<4x64xf32> to vector<1x64xf32>
    %84 = vector.broadcast %82 : vector<32x1xf32> to vector<32x64xf32>
    %85 = vector.broadcast %83 : vector<1x64xf32> to vector<32x64xf32>
    %86 = arith.addf %84, %85 : vector<32x64xf32>
    %cst_25 = arith.constant 2.000000e-01 : f32
    %87 = vector.broadcast %cst_25 : f32 to vector<32x64xf32>
    %88 = arith.mulf %87, %86 : vector<32x64xf32>
    %89 = arith.maximumf %86, %88 : vector<32x64xf32>
    %90 = arith.addf %89, %15 : vector<32x64xf32>
    %cst_26 = arith.constant dense<0xFF800000> : vector<32xf32>
    %91 = vector.multi_reduction <maximumf>, %90, %cst_26 [1] : vector<32x64xf32> to vector<32xf32>
    %92 = vector.shape_cast %91 : vector<32xf32> to vector<32x1xf32>
    %93 = vector.broadcast %92 : vector<32x1xf32> to vector<32x64xf32>
    %94 = arith.subf %90, %93 : vector<32x64xf32>
    %95 = math.exp %94 : vector<32x64xf32>
    %cst_27 = arith.constant dense<0.000000e+00> : vector<32xf32>
    %96 = vector.multi_reduction <add>, %95, %cst_27 [1] : vector<32x64xf32> to vector<32xf32>
    %97 = vector.shape_cast %96 : vector<32xf32> to vector<32x1xf32>
    %98 = vector.extract_strided_slice %5 {offsets = [0, 24], sizes = [64, 8], strides = [1, 1]} : vector<64x32xf32> to vector<64x8xf32>
    %cst_28 = arith.constant dense<0.000000e+00> : vector<32x8xf32>
    %99 = tpu.matmul %95, %98, %cst_28 {dimension_numbers = #tpu.dot_dimension_numbers<[1], [0], [0], [1], [0, 0, 1, 1], [], []>} : vector<32x64xf32>, vector<64x8xf32>, vector<32x8xf32> -> vector<32x8xf32>
    %cst_29 = arith.constant 1.000000e+00 : f32
    %100 = vector.broadcast %cst_29 : f32 to vector<32x1xf32>
    %101 = arith.divf %100, %97 : vector<32x1xf32>
    %102 = vector.broadcast %101 : vector<32x1xf32> to vector<32x8xf32>
    %103 = arith.mulf %99, %102 : vector<32x8xf32>
    %104 = tpu.concatenate %37, %59, %81, %103 in 1 : vector<32x8xf32>, vector<32x8xf32>, vector<32x8xf32>, vector<32x8xf32> -> vector<32x32xf32>
    %c0_30 = arith.constant 0 : index
    %c0_31 = arith.constant 0 : index
    %c0_32 = arith.constant 0 : index
    %105 = vector.load %arg7[%c0_30, %c0_31, %c0_32] : memref<1x32x32xf32, #tpu.memory_space<vmem>>, vector<1x32x32xf32>
    %106 = vector.shape_cast %105 : vector<1x32x32xf32> to vector<32x32xf32>
    %107 = vector.shape_cast %104 : vector<32x32xf32> to vector<1x32x32xf32>
    tpu.vector_store %arg7[%c0_30, %c0_31, %c0_32], %107 {strides = array<i32>} : memref<1x32x32xf32, #tpu.memory_space<vmem>>, vector<1x32x32xf32>,
    return
  }
  func.func @transform_0(%arg0: i32, %arg1: i32) -> (i32, i32, i32) {
    %c0_i32 = arith.constant 0 : i32
    %c0_i32_0 = arith.constant 0 : i32
    %c0_i32_1 = arith.constant 0 : i32
    return %arg0, %c0_i32, %c0_i32_0 : i32, i32, i32
  }
  func.func @transform_1(%arg0: i32, %arg1: i32) -> (i32, i32, i32) {
    %c0_i32 = arith.constant 0 : i32
    %c0_i32_0 = arith.constant 0 : i32
    return %arg0, %arg1, %c0_i32 : i32, i32, i32
  }
  func.func @transform_2(%arg0: i32, %arg1: i32) -> (i32, i32) {
    %c0_i32 = arith.constant 0 : i32
    %c0_i32_0 = arith.constant 0 : i32
    %c0_i32_1 = arith.constant 0 : i32
    return %c0_i32, %c0_i32_0 : i32, i32
  }
  func.func @transform_3(%arg0: i32, %arg1: i32) -> (i32, i32) {
    %c0_i32 = arith.constant 0 : i32
    %c0_i32_0 = arith.constant 0 : i32
    %c0_i32_1 = arith.constant 0 : i32
    return %c0_i32, %c0_i32_0 : i32, i32
  }
  func.func @transform_4(%arg0: i32, %arg1: i32) -> (i32, i32) {
    %c0_i32 = arith.constant 0 : i32
    %c0_i32_0 = arith.constant 0 : i32
    %c0_i32_1 = arith.constant 0 : i32
    return %c0_i32, %c0_i32_0 : i32, i32
  }
  func.func @transform_5(%arg0: i32, %arg1: i32) -> (i32, i32, i32) {
    %c0_i32 = arith.constant 0 : i32
    %c0_i32_0 = arith.constant 0 : i32
    return %arg0, %arg1, %c0_i32 : i32, i32, i32
  }
}

</mosaic_0001>

<llo_original>
// kernel: tpu_custom_call.1
$region0: #{tpu_custom_call.1}
  #allocation0 [shape = 'u32[]', space=smem, size = 0x4, offset = 0x4, fixed_abs, tag = 'smem constant byte address 0x4 - core index']
  #allocation1 [shape = 'u32[72,128]{1,0:T(1,128)}', space=vmem, size = 0x9000, scoped, tag = 'internal scratch']
  #allocation2 [shape = 'f32[64,32]{1,0:T(8,128)}', space=vmem, size = 0x8000, scoped, tag = 'scratch operand']
  #allocation3 [shape = 'f32[64,4]{1,0:T(8,128)}', space=vmem, size = 0x8000, scoped, tag = 'scratch operand']
  #allocation4 [shape = 'f32[4,64]{1,0:T(4,128)}', space=vmem, size = 0x800, scoped, tag = 'scratch operand']
  %s0 = inlined_call_operand.vmem [shape: f32[2,64,16], index: 0, kind: input, shape index: {}]
  %s1 = inlined_call_operand.vmem [shape: f32[2,64,64], index: 1, kind: input, shape index: {}]
  %s2 = inlined_call_operand.vmem [shape: f32[16,32], index: 2, kind: input, shape index: {}]
  %s3 = inlined_call_operand.vmem [shape: f32[32,4], index: 3, kind: input, shape index: {}]
  %s4 = inlined_call_operand.vmem [shape: f32[32,4], index: 4, kind: input, shape index: {}]
  %s5 = inlined_call_operand.vmem [shape: f32[2,64,32], index: 5, kind: output, shape index: {}]
  %s6 = sld [smem:[#allocation0]]
  $region57: #{tpu_custom_call.1} parent=0
    _
  %s8 = ssub.s32 1, %s6
  %s9 = scalar_select 0, %s8, %s6
  loop: start=0, step=1, limit=6
  $region2: #{tpu_custom_call.1} parent=0 // loop_pre_header
    _
  $region3: #{tpu_custom_call.1} parent=0 // loop_header
    %s11 = sphi 0, %s15
    %p12 = scmp.ge.s32.totalorder %s11, 6
    %s18 = sphi 0, %s30
    %s19 = sphi 0, %s26
    %s20 = sphi 0, %s18
    %s21 = sphi 0, %s19
    %s22 = sphi 0, %s20
    %s23 = sphi 0, %s21
    %s33 = sphi 0, %s35
    %s36 = sphi 0, %s33
    %s37 = sphi 0, %s36
    %s53 = sphi 0, %s37
    %s61 = sphi 0, %s63
    %s64 = sphi 0, %s61
    %s65 = sphi 0, %s64
    %s81 = sphi 0, %s65
    %s85 = sphi 0, %s85
    %s87 = sphi 0, %s85
    %s88 = sphi 0, %s87
    %s102 = sphi 0, %s88
    %s106 = sphi 0, %s106
    %s108 = sphi 0, %s106
    %s109 = sphi 0, %s108
    %s123 = sphi 0, %s109
    %s127 = sphi 0, %s127
    %s129 = sphi 0, %s127
    %s130 = sphi 0, %s129
    %s144 = sphi 0, %s130
    %s152 = sphi 0, %s154
    %s155 = sphi 0, %s152
    %s156 = sphi 0, %s155
    %s172 = sphi 0, %s156
  $region4: #{tpu_custom_call.1} parent=0 // loop_header_branch
    %14 = sbr.rel (%p12) target = $region8
  $region5: #{tpu_custom_call.1} parent=0 // loop_body
    %s16 = ssub.s32 %s11, 1
    %s17 = ssub.s32 %s11, 2
    %s24 = sadd.s32 1, %s19
    %p25 = scmp.ge.s32.totalorder %s24, 2
    %s26 = scalar_select %p25, 0, %s24
    %s27 = sadd.s32 1, %s18
    %s28 = scalar_select %p25, %s27, %s18
    %p29 = scmp.ge.s32.totalorder %s28, 2
    %s30 = scalar_select %p29, 0, %s28
    %s31 = ssub.s32 %s18, %s30
    %p32 = scmp.eq.s32.totalorder %s31, 0
    %s34 = sadd.s32 %s33, 1
    %s35 = scalar_select %p32, %s33, %s34
    %p38 = pneg %p32
    %p39 = scmp.eq.s32.totalorder %s11, 3
    %p40 = por %p38, %p39
    %p41 = scmp.ne.s32.totalorder %s33, %s36
    %p42 = scmp.eq.s32.totalorder %s11, 0
    %p43 = por %p41, %p42
    %p44 = scmp.ne.s32.totalorder %s33, %s36
    %p45 = scmp.eq.s32.totalorder %s16, 3
    %p46 = por %p44, %p45
    %p47 = scmp.ne.s32.totalorder %s36, %s37
    %p48 = scmp.eq.s32.totalorder %s16, 0
    %p49 = por %p47, %p48
    %p50 = scmp.ne.s32.totalorder %s36, %s37
    %p51 = scmp.eq.s32.totalorder %s17, 3
    %p52 = por %p50, %p51
    %p54 = scmp.ne.s32.totalorder %s37, %s53
    %p55 = scmp.eq.s32.totalorder %s17, 0
    %p56 = por %p54, %p55
    %s57 = ssub.s32 %s18, %s30
    %s58 = ssub.s32 %s19, %s26
    %s59 = sor.u32 %s57, %s58
    %p60 = scmp.eq.s32.totalorder %s59, 0
    %s62 = sadd.s32 %s61, 1
    %s63 = scalar_select %p60, %s61, %s62
    %p66 = pneg %p60
    %p67 = scmp.eq.s32.totalorder %s11, 3
    %p68 = por %p66, %p67
    %p69 = scmp.ne.s32.totalorder %s61, %s64
    %p70 = scmp.eq.s32.totalorder %s11, 0
    %p71 = por %p69, %p70
    %p72 = scmp.ne.s32.totalorder %s61, %s64
    %p73 = scmp.eq.s32.totalorder %s16, 3
    %p74 = por %p72, %p73
    %p75 = scmp.ne.s32.totalorder %s64, %s65
    %p76 = scmp.eq.s32.totalorder %s16, 0
    %p77 = por %p75, %p76
    %p78 = scmp.ne.s32.totalorder %s64, %s65
    %p79 = scmp.eq.s32.totalorder %s17, 3
    %p80 = por %p78, %p79
    %p82 = scmp.ne.s32.totalorder %s65, %s81
    %p83 = scmp.eq.s32.totalorder %s17, 0
    %p84 = por %p82, %p83
    %s86 = sadd.s32 %s85, 1
    %p89 = scmp.eq.s32.totalorder %s11, 3
    %p90 = scmp.ne.s32.totalorder %s85, %s87
    %p91 = scmp.eq.s32.totalorder %s11, 0
    %p92 = por %p90, %p91
    %p93 = scmp.ne.s32.totalorder %s85, %s87
    %p94 = scmp.eq.s32.totalorder %s16, 3
    %p95 = por %p93, %p94
    %p96 = scmp.ne.s32.totalorder %s87, %s88
    %p97 = scmp.eq.s32.totalorder %s16, 0
    %p98 = por %p96, %p97
    %p99 = scmp.ne.s32.totalorder %s87, %s88
    %p100 = scmp.eq.s32.totalorder %s17, 3
    %p101 = por %p99, %p100
    %p103 = scmp.ne.s32.totalorder %s88, %s102
    %p104 = scmp.eq.s32.totalorder %s17, 0
    %p105 = por %p103, %p104
    %s107 = sadd.s32 %s106, 1
    %p110 = scmp.eq.s32.totalorder %s11, 3
    %p111 = scmp.ne.s32.totalorder %s106, %s108
    %p112 = scmp.eq.s32.totalorder %s11, 0
    %p113 = por %p111, %p112
    %p114 = scmp.ne.s32.totalorder %s106, %s108
    %p115 = scmp.eq.s32.totalorder %s16, 3
    %p116 = por %p114, %p115
    %p117 = scmp.ne.s32.totalorder %s108, %s109
    %p118 = scmp.eq.s32.totalorder %s16, 0
    %p119 = por %p117, %p118
    %p120 = scmp.ne.s32.totalorder %s108, %s109
    %p121 = scmp.eq.s32.totalorder %s17, 3
    %p122 = por %p120, %p121
    %p124 = scmp.ne.s32.totalorder %s109, %s123
    %p125 = scmp.eq.s32.totalorder %s17, 0
    %p126 = por %p124, %p125
    %s128 = sadd.s32 %s127, 1
    %p131 = scmp.eq.s32.totalorder %s11, 3
    %p132 = scmp.ne.s32.totalorder %s127, %s129
    %p133 = scmp.eq.s32.totalorder %s11, 0
    %p134 = por %p132, %p133
    %p135 = scmp.ne.s32.totalorder %s127, %s129
    %p136 = scmp.eq.s32.totalorder %s16, 3
    %p137 = por %p135, %p136
    %p138 = scmp.ne.s32.totalorder %s129, %s130
    %p139 = scmp.eq.s32.totalorder %s16, 0
    %p140 = por %p138, %p139
    %p141 = scmp.ne.s32.totalorder %s129, %s130
    %p142 = scmp.eq.s32.totalorder %s17, 3
    %p143 = por %p141, %p142
    %p145 = scmp.ne.s32.totalorder %s130, %s144
    %p146 = scmp.eq.s32.totalorder %s17, 0
    %p147 = por %p145, %p146
    %s148 = ssub.s32 %s18, %s30
    %s149 = ssub.s32 %s19, %s26
    %s150 = sor.u32 %s148, %s149
    %p151 = scmp.eq.s32.totalorder %s150, 0
    %s153 = sadd.s32 %s152, 1
    %s154 = scalar_select %p151, %s152, %s153
    %p157 = pneg %p151
    %p158 = scmp.eq.s32.totalorder %s11, 3
    %p159 = por %p157, %p158
    %p160 = scmp.ne.s32.totalorder %s152, %s155
    %p161 = scmp.eq.s32.totalorder %s11, 0
    %p162 = por %p160, %p161
    %p163 = scmp.ne.s32.totalorder %s152, %s155
    %p164 = scmp.eq.s32.totalorder %s16, 3
    %p165 = por %p163, %p164
    %p166 = scmp.ne.s32.totalorder %s155, %s156
    %p167 = scmp.eq.s32.totalorder %s16, 0
    %p168 = por %p166, %p167
    %p169 = scmp.ne.s32.totalorder %s155, %s156
    %p170 = scmp.eq.s32.totalorder %s17, 3
    %p171 = por %p169, %p170
    %p173 = scmp.ne.s32.totalorder %s156, %s172
    %p174 = scmp.eq.s32.totalorder %s17, 0
    %p175 = por %p173, %p174
    %p176 = scmp.le.s32.totalorder 1, %s11
    %p177 = scmp.lt.s32.totalorder %s11, 5
    %p178 = pnand %p176, %p177
    %p179 = pneg %p178
    // Predicated region
    $region9: #{tpu_custom_call.1} parent=5 // pred_check
      _
    $region10: #{tpu_custom_call.1} parent=5 // pred_check_branch
      %181 = sbr.rel (%p178) target = $region12
    $region11: #{tpu_custom_call.1} parent=5 // pred_region
      %s182 = ssub.s32 %s11, 1
      // Predicated region
      $region13: #{tpu_custom_call.1} parent=11 // pred_check
        %p183 = pneg %p98
      $region14: #{tpu_custom_call.1} parent=11 // pred_check_branch
        %185 = sbr.rel (%p183) target = $region16
      $region15: #{tpu_custom_call.1} parent=11 // pred_region
        _
      $region16: #{tpu_custom_call.1} parent=11 // pred_fallthru
        _
      // Predicated region
      $region17: #{tpu_custom_call.1} parent=11 // pred_check
        %p186 = pneg %p119
      $region18: #{tpu_custom_call.1} parent=11 // pred_check_branch
        %188 = sbr.rel (%p186) target = $region20
      $region19: #{tpu_custom_call.1} parent=11 // pred_region
        _
      $region20: #{tpu_custom_call.1} parent=11 // pred_fallthru
        _
      // Predicated region
      $region21: #{tpu_custom_call.1} parent=11 // pred_check
        %p189 = pneg %p140
      $region22: #{tpu_custom_call.1} parent=11 // pred_check_branch
        %191 = sbr.rel (%p189) target = $region24
      $region23: #{tpu_custom_call.1} parent=11 // pred_region
        _
      $region24: #{tpu_custom_call.1} parent=11 // pred_fallthru
        _
    $region12: #{tpu_custom_call.1} parent=5 // pred_fallthru
      _
    %p192 = scmp.lt.s32.totalorder %s11, 4
    // Predicated region
    $region25: #{tpu_custom_call.1} parent=5 // pred_check
      %p193 = pneg %p192
    $region26: #{tpu_custom_call.1} parent=5 // pred_check_branch
      %195 = sbr.rel (%p193) target = $region28
    $region27: #{tpu_custom_call.1} parent=5 // pred_region
      // Predicated region
      $region29: #{tpu_custom_call.1} parent=27 // pred_check
        %p196 = pneg %p43
      $region30: #{tpu_custom_call.1} parent=27 // pred_check_branch
        %198 = sbr.rel (%p196) target = $region32
      $region31: #{tpu_custom_call.1} parent=27 // pred_region
        %p199 = scmp.lt.s32.totalorder %s18, 1
        %s200 = scalar_select %p199, %s18, 1
        %s201 = smul.addr %s200, 8
        %s202 = smul.addr %s201, 8
        %s203 = scalar_lea.vmem %s0, %s202
      $region32: #{tpu_custom_call.1} parent=27 // pred_fallthru
        _
      // Predicated region
      $region33: #{tpu_custom_call.1} parent=27 // pred_check
        %p204 = pneg %p71
      $region34: #{tpu_custom_call.1} parent=27 // pred_check_branch
        %206 = sbr.rel (%p204) target = $region36
      $region35: #{tpu_custom_call.1} parent=27 // pred_region
        %s207 = smul.u32 4, %s19
        %p208 = scmp.lt.s32.totalorder %s18, 1
        %s209 = scalar_select %p208, %s18, 1
        %p210 = scmp.lt.s32.totalorder %s207, 7
        %s211 = scalar_select %p210, %s207, 7
        %s212 = smul.addr %s209, 8
        %s213 = sadd.s32 %s211, %s212
        %s214 = smul.addr %s213, 8
        %s215 = scalar_lea.vmem %s1, %s214
        %s216 = smul.u32 4, %s19
      $region36: #{tpu_custom_call.1} parent=27 // pred_fallthru
        _
    $region28: #{tpu_custom_call.1} parent=5 // pred_fallthru
      _
    %p217 = scmp.le.s32.totalorder 1, %s11
    %p218 = scmp.lt.s32.totalorder %s11, 5
    %p219 = pnand %p217, %p218
    %p220 = pneg %p219
    // Predicated region
    $region37: #{tpu_custom_call.1} parent=5 // pred_check
      _
    $region38: #{tpu_custom_call.1} parent=5 // pred_check_branch
      %222 = sbr.rel (%p219) target = $region40
    $region39: #{tpu_custom_call.1} parent=5 // pred_region
      %s223 = ssub.s32 %s11, 1
      %p224 = scmp.lt.s32.totalorder %s20, 1
      %s225 = scalar_select %p224, %s20, 1
      %s226 = smul.addr %s225, 8
      %s227 = smul.addr %s226, 8
      %s228 = scalar_lea.vmem %s0, %s227
      %p229 = pneg %p49
      %p230 = pneg %p46
      %s231 = smul.u32 4, %s21
      %p232 = scmp.lt.s32.totalorder %s20, 1
      %s233 = scalar_select %p232, %s20, 1
      %p234 = scmp.lt.s32.totalorder %s231, 7
      %s235 = scalar_select %p234, %s231, 7
      %s236 = smul.addr %s233, 8
      %s237 = sadd.s32 %s235, %s236
      %s238 = smul.addr %s237, 8
      %s239 = scalar_lea.vmem %s1, %s238
      %p240 = pneg %p77
      %p241 = pneg %p74
      %p242 = pneg %p98
      %p243 = pneg %p95
      %p244 = pneg %p119
      %p245 = pneg %p116
      %p246 = pneg %p140
      %p247 = pneg %p137
      %p248 = pneg %p168
      %p249 = pneg %p165
      %s250 = smul.u32 4, %s21
      %p251 = scmp.lt.s32.totalorder %s20, 1
      %s252 = scalar_select %p251, %s20, 1
      %p253 = scmp.lt.s32.totalorder %s250, 7
      %s254 = scalar_select %p253, %s250, 7
      %s255 = smul.addr %s252, 8
      %s256 = sadd.s32 %s254, %s255
      %s257 = smul.addr %s256, 8
      %s258 = scalar_lea.vmem %s5, %s257
      %p259 = scmp.lt.s32.totalorder %s20, 1
      %s260 = scalar_select %p259, %s20, 1
      %s261 = smul.addr %s260, 8
      %s262 = smul.addr %s261, 8
      %s263 = scalar_lea.vmem %s0, %s262
      %s264 = smul.u32 4, %s21
      %p265 = scmp.lt.s32.totalorder %s20, 1
      %s266 = scalar_select %p265, %s20, 1
      %p267 = scmp.lt.s32.totalorder %s264, 7
      %s268 = scalar_select %p267, %s264, 7
      %s269 = smul.addr %s266, 8
      %s270 = sadd.s32 %s268, %s269
      %s271 = smul.addr %s270, 8
      %s272 = scalar_lea.vmem %s1, %s271
      %s273 = smul.u32 4, %s21
      %s274 = smul.u32 4, %s21
      %p275 = scmp.lt.s32.totalorder %s20, 1
      %s276 = scalar_select %p275, %s20, 1
      %p277 = scmp.lt.s32.totalorder %s274, 7
      %s278 = scalar_select %p277, %s274, 7
      %s279 = smul.addr %s276, 8
      %s280 = sadd.s32 %s278, %s279
      %s281 = smul.addr %s280, 8
      %s282 = scalar_lea.vmem %s5, %s281
      %s283 = smul.u32 4, %s21
      %p284 = scmp.eq.s32.totalorder %s21, 0
      // Predicated region
      $region41: #{tpu_custom_call.1} parent=39 // pred_check
        %p285 = pneg %p284
      $region42: #{tpu_custom_call.1} parent=39 // pred_check_branch
        %287 = sbr.rel (%p285) target = $region44
      $region43: #{tpu_custom_call.1} parent=39 // pred_region
        %v288 = vld [vmem:[%s263] sm:$0xff]
        %v289 = vld [vmem:[%s263 + $0x8] sm:$0xff]
        %v290 = vld [vmem:[%s263 + $0x10] sm:$0xff]
        %v291 = vld [vmem:[%s263 + $0x18] sm:$0xff]
        %v292 = vld [vmem:[%s263 + $0x20] sm:$0xff]
        %v293 = vld [vmem:[%s263 + $0x28] sm:$0xff]
        %v294 = vld [vmem:[%s263 + $0x30] sm:$0xff]
        %v295 = vld [vmem:[%s263 + $0x38] sm:$0xff]
        %v296 = vld [vmem:[%s2] sm:$0xff]
        %v297 = vld [vmem:[%s2 + $0x8] sm:$0xff]
        %vm298 = vcmask 130048
        %v300 = vsel %vm298, %v288, 0
        %v303 = vsel %vm298, %v289, 0
        %v306 = vsel %vm298, %v290, 0
        %v309 = vsel %vm298, %v291, 0
        %v312 = vsel %vm298, %v292, 0
        %v315 = vsel %vm298, %v293, 0
        %v318 = vsel %vm298, %v294, 0
        %v321 = vsel %vm298, %v295, 0
        %323 = vmatpush.msra.mxu0 0.0
        %324 = vmatpush.msra.mxu0 0.0
        %325 = vmatpush.msra.mxu0 0.0
        %326 = vmatpush.msra.mxu0 0.0
        %327 = vmatpush.msra.mxu0 0.0
        %328 = vmatpush.msra.mxu0 0.0
        %329 = vmatpush.msra.mxu0 0.0
        %330 = vmatpush.msra.mxu0 0.0
        %331 = vmatpush.msra.mxu0 0.0
        %332 = vmatpush.msra.mxu0 0.0
        %333 = vmatpush.msra.mxu0 0.0
        %334 = vmatpush.msra.mxu0 0.0
        %335 = vmatpush.msra.mxu0 0.0
        %336 = vmatpush.msra.mxu0 0.0
        %337 = vmatpush.msra.mxu0 %v297
        %338 = vmatpush.msra.mxu0 %v296
        %339 = vmatmul.f32.gmra.mxu0 %v300
        %v340 = vpop.f32.mrf.mxu0
        %v341 = vadd.f32 0.0, %v340
        %342 = vmatmul.f32.gmra.mxu0 %v303
        %v343 = vpop.f32.mrf.mxu0
        %v344 = vadd.f32 0.0, %v343
        %345 = vmatmul.f32.gmra.mxu0 %v306
        %v346 = vpop.f32.mrf.mxu0
        %v347 = vadd.f32 0.0, %v346
        %348 = vmatmul.f32.gmra.mxu0 %v309
        %v349 = vpop.f32.mrf.mxu0
        %v350 = vadd.f32 0.0, %v349
        %351 = vmatmul.f32.gmra.mxu0 %v312
        %v352 = vpop.f32.mrf.mxu0
        %v353 = vadd.f32 0.0, %v352
        %354 = vmatmul.f32.gmra.mxu0 %v315
        %v355 = vpop.f32.mrf.mxu0
        %v356 = vadd.f32 0.0, %v355
        %357 = vmatmul.f32.gmra.mxu0 %v318
        %v358 = vpop.f32.mrf.mxu0
        %v359 = vadd.f32 0.0, %v358
        %360 = vmatmul.f32.gmra.mxu0 %v321
        %v361 = vpop.f32.mrf.mxu0
        %v362 = vadd.f32 0.0, %v361
        %363 = vdwg.mxu0
        %vm364 = vcmask 261120
        %365 = vst.msk [vmem:[#allocation2] sm:$0xff] %vm364, %v341
        %366 = vst.msk [vmem:[#allocation2 + $0x8] sm:$0xff] %vm364, %v344
        %367 = vst.msk [vmem:[#allocation2 + $0x10] sm:$0xff] %vm364, %v347
        %368 = vst.msk [vmem:[#allocation2 + $0x18] sm:$0xff] %vm364, %v350
        %369 = vst.msk [vmem:[#allocation2 + $0x20] sm:$0xff] %vm364, %v353
        %370 = vst.msk [vmem:[#allocation2 + $0x28] sm:$0xff] %vm364, %v356
        %371 = vst.msk [vmem:[#allocation2 + $0x30] sm:$0xff] %vm364, %v359
        %372 = vst.msk [vmem:[#allocation2 + $0x38] sm:$0xff] %vm364, %v362
        %v373 = vld [vmem:[%s3] sm:$0xff]
        %v374 = vld [vmem:[%s3 + $0x8] sm:$0xff]
        %v375 = vld [vmem:[%s3 + $0x10] sm:$0xff]
        %v376 = vld [vmem:[%s3 + $0x18] sm:$0xff]
        %v378 = vsel %vm364, %v341, 0
        %v381 = vsel %vm364, %v344, 0
        %v384 = vsel %vm364, %v347, 0
        %v387 = vsel %vm364, %v350, 0
        %v390 = vsel %vm364, %v353, 0
        %v393 = vsel %vm364, %v356, 0
        %v396 = vsel %vm364, %v359, 0
        %v399 = vsel %vm364, %v362, 0
        %401 = vmatpush.msra.mxu0 0.0
        %402 = vmatpush.msra.mxu0 0.0
        %403 = vmatpush.msra.mxu0 0.0
        %404 = vmatpush.msra.mxu0 0.0
        %405 = vmatpush.msra.mxu0 0.0
        %406 = vmatpush.msra.mxu0 0.0
        %407 = vmatpush.msra.mxu0 0.0
        %408 = vmatpush.msra.mxu0 0.0
        %409 = vmatpush.msra.mxu0 0.0
        %410 = vmatpush.msra.mxu0 0.0
        %411 = vmatpush.msra.mxu0 0.0
        %412 = vmatpush.msra.mxu0 0.0
        %413 = vmatpush.msra.mxu0 %v376
        %414 = vmatpush.msra.mxu0 %v375
        %415 = vmatpush.msra.mxu0 %v374
        %416 = vmatpush.msra.mxu0 %v373
        %417 = vmatmul.f32.gmra.mxu0 %v378
        %v418 = vpop.f32.mrf.mxu0
        %v419 = vadd.f32 0.0, %v418
        %420 = vmatmul.f32.gmra.mxu0 %v381
        %v421 = vpop.f32.mrf.mxu0
        %v422 = vadd.f32 0.0, %v421
        %423 = vmatmul.f32.gmra.mxu0 %v384
        %v424 = vpop.f32.mrf.mxu0
        %v425 = vadd.f32 0.0, %v424
        %426 = vmatmul.f32.gmra.mxu0 %v387
        %v427 = vpop.f32.mrf.mxu0
        %v428 = vadd.f32 0.0, %v427
        %429 = vmatmul.f32.gmra.mxu0 %v390
        %v430 = vpop.f32.mrf.mxu0
        %v431 = vadd.f32 0.0, %v430
        %432 = vmatmul.f32.gmra.mxu0 %v393
        %v433 = vpop.f32.mrf.mxu0
        %v434 = vadd.f32 0.0, %v433
        %435 = vmatmul.f32.gmra.mxu0 %v396
        %v436 = vpop.f32.mrf.mxu0
        %v437 = vadd.f32 0.0, %v436
        %438 = vmatmul.f32.gmra.mxu0 %v399
        %v439 = vpop.f32.mrf.mxu0
        %v440 = vadd.f32 0.0, %v439
        %441 = vdwg.mxu0
        %vm442 = vcmask 31744
        %443 = vst.msk [vmem:[#allocation3] sm:$0xff] %vm442, %v419
        %444 = vst.msk [vmem:[#allocation3 + $0x8] sm:$0xff] %vm442, %v422
        %445 = vst.msk [vmem:[#allocation3 + $0x10] sm:$0xff] %vm442, %v425
        %446 = vst.msk [vmem:[#allocation3 + $0x18] sm:$0xff] %vm442, %v428
        %447 = vst.msk [vmem:[#allocation3 + $0x20] sm:$0xff] %vm442, %v431
        %448 = vst.msk [vmem:[#allocation3 + $0x28] sm:$0xff] %vm442, %v434
        %449 = vst.msk [vmem:[#allocation3 + $0x30] sm:$0xff] %vm442, %v437
        %450 = vst.msk [vmem:[#allocation3 + $0x38] sm:$0xff] %vm442, %v440
        %v451 = vld [vmem:[%s4] sm:$0xff]
        %v452 = vld [vmem:[%s4 + $0x8] sm:$0xff]
        %v453 = vld [vmem:[%s4 + $0x10] sm:$0xff]
        %v454 = vld [vmem:[%s4 + $0x18] sm:$0xff]
        %455 = vmatpush.msra.mxu0 0.0
        %456 = vmatpush.msra.mxu0 0.0
        %457 = vmatpush.msra.mxu0 0.0
        %458 = vmatpush.msra.mxu0 0.0
        %459 = vmatpush.msra.mxu0 0.0
        %460 = vmatpush.msra.mxu0 0.0
        %461 = vmatpush.msra.mxu0 0.0
        %462 = vmatpush.msra.mxu0 0.0
        %463 = vmatpush.msra.mxu0 0.0
        %464 = vmatpush.msra.mxu0 0.0
        %465 = vmatpush.msra.mxu0 0.0
        %466 = vmatpush.msra.mxu0 0.0
        %467 = vmatpush.msra.mxu0 %v454
        %468 = vmatpush.msra.mxu0 %v453
        %469 = vmatpush.msra.mxu0 %v452
        %470 = vmatpush.msra.mxu0 %v451
        %471 = vmatmul.f32.gmra.mxu0 %v378
        %v472 = vpop.f32.mrf.mxu0
        %v473 = vadd.f32 0.0, %v472
        %474 = vmatmul.f32.gmra.mxu0 %v381
        %v475 = vpop.f32.mrf.mxu0
        %v476 = vadd.f32 0.0, %v475
        %477 = vmatmul.f32.gmra.mxu0 %v384
        %v478 = vpop.f32.mrf.mxu0
        %v479 = vadd.f32 0.0, %v478
        %480 = vmatmul.f32.gmra.mxu0 %v387
        %v481 = vpop.f32.mrf.mxu0
        %v482 = vadd.f32 0.0, %v481
        %483 = vmatmul.f32.gmra.mxu0 %v390
        %v484 = vpop.f32.mrf.mxu0
        %v485 = vadd.f32 0.0, %v484
        %486 = vmatmul.f32.gmra.mxu0 %v393
        %v487 = vpop.f32.mrf.mxu0
        %v488 = vadd.f32 0.0, %v487
        %489 = vmatmul.f32.gmra.mxu0 %v396
        %v490 = vpop.f32.mrf.mxu0
        %v491 = vadd.f32 0.0, %v490
        %492 = vmatmul.f32.gmra.mxu0 %v399
        %v493 = vpop.f32.mrf.mxu0
        %v494 = vadd.f32 0.0, %v493
        %495 = vdwg.mxu0
        %496 = vxpose.xlu0.b32.start [1/16] %v473, 128
        %497 = vxpose.xlu0.b32.cont [2/16] %v476, 128
        %498 = vxpose.xlu0.b32.cont [3/16] %v479, 128
        %499 = vxpose.xlu0.b32.cont [4/16] %v482, 128
        %500 = vxpose.xlu0.b32.cont [5/16] %v485, 128
        %501 = vxpose.xlu0.b32.cont [6/16] %v488, 128
        %502 = vxpose.xlu0.b32.cont [7/16] %v491, 128
        %503 = vxpose.xlu0.b32.cont [8/16] %v494, 128
        %504 = vxpose.xlu0.b32.cont [9/16] 0.0, 128
        %505 = vxpose.xlu0.b32.cont [10/16] 0.0, 128
        %506 = vxpose.xlu0.b32.cont [11/16] 0.0, 128
        %507 = vxpose.xlu0.b32.cont [12/16] 0.0, 128
        %508 = vxpose.xlu0.b32.cont [13/16] 0.0, 128
        %509 = vxpose.xlu0.b32.cont [14/16] 0.0, 128
        %510 = vxpose.xlu0.b32.cont [15/16] 0.0, 128
        %511 = vxpose.xlu0.b32.end [16/16] 0.0, 128
        %v512 = vpop.trf.xlu0
        %v513 = vpop.trf.xlu0
        %v514 = vpop.trf.xlu0
        %v515 = vpop.trf.xlu0
        %v516 = vpop.trf.xlu0
        %v517 = vpop.trf.xlu0
        %v518 = vpop.trf.xlu0
        %v519 = vpop.trf.xlu0
        %v520 = vpop.trf.xlu0
        %v521 = vpop.trf.xlu0
        %v522 = vpop.trf.xlu0
        %v523 = vpop.trf.xlu0
        %v524 = vpop.trf.xlu0
        %v525 = vpop.trf.xlu0
        %v526 = vpop.trf.xlu0
        %v527 = vpop.trf.xlu0
        %vm528 = vcmask 519168
        %529 = vst.msk [vmem:[#allocation4] sm:$0xf] %vm528, %v512
      $region44: #{tpu_custom_call.1} parent=39 // pred_fallthru
        _
      %s530 = smul.u32 %s21, 32
      %v531 = vld [vmem:[#allocation2] sm:$0xff]
      %v532 = vld [vmem:[#allocation2 + $0x8] sm:$0xff]
      %v533 = vld [vmem:[#allocation2 + $0x10] sm:$0xff]
      %v534 = vld [vmem:[#allocation2 + $0x18] sm:$0xff]
      %v535 = vld [vmem:[#allocation2 + $0x20] sm:$0xff]
      %v536 = vld [vmem:[#allocation2 + $0x28] sm:$0xff]
      %v537 = vld [vmem:[#allocation2 + $0x30] sm:$0xff]
      %v538 = vld [vmem:[#allocation2 + $0x38] sm:$0xff]
      %s539 = scalar_lea.vmem [#allocation3], %s530
      %v540 = vld [vmem:[%s539] sm:$0xff]
      %v541 = vld [vmem:[%s539 + $0x8] sm:$0xff]
      %v542 = vld [vmem:[%s539 + $0x10] sm:$0xff]
      %v543 = vld [vmem:[%s539 + $0x18] sm:$0xff]
      %v544 = vld [vmem:[#allocation4] sm:$0xf]
      %v545 = vld [vmem:[%s272] sm:$0xff]
      %v546 = vld [vmem:[%s272 + $0x8] sm:$0xff]
      %v547 = vld [vmem:[%s272 + $0x10] sm:$0xff]
      %v548 = vld [vmem:[%s272 + $0x18] sm:$0xff]
      %vm549 = vcmp.eq.f32.partialorder %v545, 0.0
      %vm550 = vcmp.eq.f32.partialorder %v546, 0.0
      %vm551 = vcmp.eq.f32.partialorder %v547, 0.0
      %vm552 = vcmp.eq.f32.partialorder %v548, 0.0
      %v553 = vsel %vm549, -inf, 0.0
      %v554 = vsel %vm550, -inf, 0.0
      %v555 = vsel %vm551, -inf, 0.0
      %v556 = vsel %vm552, -inf, 0.0
      %558 = vset.pattern.permute.xlu0 0
      %559 = vperm.xlu0 %558, %v540
      %v560 = vpop.permute.xlu0 %559
      %563 = vset.pattern.permute.xlu0 0
      %564 = vperm.xlu0 %563, %v541
      %v565 = vpop.permute.xlu0 %564
      %568 = vset.pattern.permute.xlu0 0
      %569 = vperm.xlu0 %568, %v542
      %v570 = vpop.permute.xlu0 %569
      %573 = vset.pattern.permute.xlu0 0
      %574 = vperm.xlu0 %573, %v543
      %v575 = vpop.permute.xlu0 %574
      %v577 = vperm.slane %v544, 0
      %v578 = vadd.f32 %v560, %v577
      %v579 = vadd.f32 %v565, %v577
      %v580 = vadd.f32 %v570, %v577
      %v581 = vadd.f32 %v575, %v577
      %v582 = vmul.f32 %v578, 0.2
      %v583 = vmul.f32 %v579, 0.2
      %v584 = vmul.f32 %v580, 0.2
      %v585 = vmul.f32 %v581, 0.2
      %v586 = vmax.f32 %v578, %v582
      %v587 = vmax.f32 %v579, %v583
      %v588 = vmax.f32 %v580, %v584
      %v589 = vmax.f32 %v581, %v585
      %v590 = vadd.f32 %v586, %v553
      %v591 = vadd.f32 %v587, %v554
      %v592 = vadd.f32 %v588, %v555
      %v593 = vadd.f32 %v589, %v556
      %vm594 = vcmask 523264
      %v595 = vsel %vm594, %v590, -inf
      %596 = vmax.xlane.f32.xlu0 %v595
      %v597 = vpop.xlane.xlu0 %596
      %v598 = vsel %vm594, %v591, -inf
      %599 = vmax.xlane.f32.xlu0 %v598
      %v600 = vpop.xlane.xlu0 %599
      %v601 = vsel %vm594, %v592, -inf
      %602 = vmax.xlane.f32.xlu0 %v601
      %v603 = vpop.xlane.xlu0 %602
      %v604 = vsel %vm594, %v593, -inf
      %605 = vmax.xlane.f32.xlu0 %v604
      %v606 = vpop.xlane.xlu0 %605
      %v607 = vsub.f32 %v590, %v597
      %v608 = vsub.f32 %v591, %v600
      %v609 = vsub.f32 %v592, %v603
      %v610 = vsub.f32 %v593, %v606
      %v611 = vmul.f32 %v607, 1.442695
      %v612 = vpow.pop %v611
      %v613 = vmul.f32 %v608, 1.442695
      %v614 = vpow.pop %v613
      %v615 = vmul.f32 %v609, 1.442695
      %v616 = vpow.pop %v615
      %v617 = vmul.f32 %v610, 1.442695
      %v618 = vpow.pop %v617
      %v619 = vsel %vm594, %v612, 0.0
      %620 = vadd.xlane.f32.xlu0 %v619
      %v621 = vpop.xlane.xlu0 %620
      %v622 = vsel %vm594, %v614, 0.0
      %623 = vadd.xlane.f32.xlu0 %v622
      %v624 = vpop.xlane.xlu0 %623
      %v625 = vsel %vm594, %v616, 0.0
      %626 = vadd.xlane.f32.xlu0 %v625
      %v627 = vpop.xlane.xlu0 %626
      %v628 = vsel %vm594, %v618, 0.0
      %629 = vadd.xlane.f32.xlu0 %v628
      %v630 = vpop.xlane.xlu0 %629
      %v632 = vsel %vm594, %v612, 0
      %v635 = vsel %vm594, %v614, 0
      %v638 = vsel %vm594, %v616, 0
      %v641 = vsel %vm594, %v618, 0
      %643 = vmatpush.msra.mxu0 0.0
      %644 = vmatpush.msra.mxu0 0.0
      %645 = vmatpush.msra.mxu0 0.0
      %646 = vmatpush.msra.mxu0 0.0
      %647 = vmatpush.msra.mxu0 0.0
      %648 = vmatpush.msra.mxu0 0.0
      %649 = vmatpush.msra.mxu0 0.0
      %650 = vmatpush.msra.mxu0 0.0
      %651 = vmatpush.msra.mxu0 %v538
      %652 = vmatpush.msra.mxu0 %v537
      %653 = vmatpush.msra.mxu0 %v536
      %654 = vmatpush.msra.mxu0 %v535
      %655 = vmatpush.msra.mxu0 %v534
      %656 = vmatpush.msra.mxu0 %v533
      %657 = vmatpush.msra.mxu0 %v532
      %658 = vmatpush.msra.mxu0 %v531
      %659 = vmatmul.f32.gmra.mxu0 %v632
      %v660 = vpop.f32.mrf.mxu0
      %v661 = vadd.f32 0.0, %v660
      %662 = vmatmul.f32.gmra.mxu0 %v635
      %v663 = vpop.f32.mrf.mxu0
      %v664 = vadd.f32 0.0, %v663
      %665 = vmatmul.f32.gmra.mxu0 %v638
      %v666 = vpop.f32.mrf.mxu0
      %v667 = vadd.f32 0.0, %v666
      %668 = vmatmul.f32.gmra.mxu0 %v641
      %v669 = vpop.f32.mrf.mxu0
      %v670 = vadd.f32 0.0, %v669
      %671 = vdwg.mxu0
      %v672 = vrcp.pop %v621
      %v673 = vmul.f32 %v621, %v672
      %v674 = vsub.f32 1.0, %v673
      %v675 = vmul.f32 %v672, %v674
      %v676 = vadd.f32 %v672, %v675
      %vm677 = vweird.f32 %v621
      %vm678 = vweird.f32 %v672
      %vm679 = vmor %vm677, %vm678
      %v680 = vsel %vm679, %v672, %v676
      %v681 = vand.u32 2147483647, %v621
      %vm682 = vcmp.eq.f32.partialorder %v681, 8.507059e+37
      %v683 = vand.u32 %v621, 2147483648
      %v684 = vor.u32 1.1754944e-38, %v683
      %v685 = vsel %vm682, %v684, %v680
      %v686 = vmul.f32 1.0, %v685
      %v687 = vrcp.pop %v624
      %v688 = vmul.f32 %v624, %v687
      %v689 = vsub.f32 1.0, %v688
      %v690 = vmul.f32 %v687, %v689
      %v691 = vadd.f32 %v687, %v690
      %vm692 = vweird.f32 %v624
      %vm693 = vweird.f32 %v687
      %vm694 = vmor %vm692, %vm693
      %v695 = vsel %vm694, %v687, %v691
      %v696 = vand.u32 2147483647, %v624
      %vm697 = vcmp.eq.f32.partialorder %v696, 8.507059e+37
      %v698 = vand.u32 %v624, 2147483648
      %v699 = vor.u32 1.1754944e-38, %v698
      %v700 = vsel %vm697, %v699, %v695
      %v701 = vmul.f32 1.0, %v700
      %v702 = vrcp.pop %v627
      %v703 = vmul.f32 %v627, %v702
      %v704 = vsub.f32 1.0, %v703
      %v705 = vmul.f32 %v702, %v704
      %v706 = vadd.f32 %v702, %v705
      %vm707 = vweird.f32 %v627
      %vm708 = vweird.f32 %v702
      %vm709 = vmor %vm707, %vm708
      %v710 = vsel %vm709, %v702, %v706
      %v711 = vand.u32 2147483647, %v627
      %vm712 = vcmp.eq.f32.partialorder %v711, 8.507059e+37
      %v713 = vand.u32 %v627, 2147483648
      %v714 = vor.u32 1.1754944e-38, %v713
      %v715 = vsel %vm712, %v714, %v710
      %v716 = vmul.f32 1.0, %v715
      %v717 = vrcp.pop %v630
      %v718 = vmul.f32 %v630, %v717
      %v719 = vsub.f32 1.0, %v718
      %v720 = vmul.f32 %v717, %v719
      %v721 = vadd.f32 %v717, %v720
      %vm722 = vweird.f32 %v630
      %vm723 = vweird.f32 %v717
      %vm724 = vmor %vm722, %vm723
      %v725 = vsel %vm724, %v717, %v721
      %v726 = vand.u32 2147483647, %v630
      %vm727 = vcmp.eq.f32.partialorder %v726, 8.507059e+37
      %v728 = vand.u32 %v630, 2147483648
      %v729 = vor.u32 1.1754944e-38, %v728
      %v730 = vsel %vm727, %v729, %v725
      %v731 = vmul.f32 1.0, %v730
      %v732 = vmul.f32 %v661, %v686
      %v733 = vmul.f32 %v664, %v701
      %v734 = vmul.f32 %v667, %v716
      %v735 = vmul.f32 %v670, %v731
      %736 = vset.pattern.permute.xlu0 1
      %737 = vperm.xlu0 %736, %v540
      %v738 = vpop.permute.xlu0 %737
      %740 = vset.pattern.permute.xlu0 1
      %741 = vperm.xlu0 %740, %v541
      %v742 = vpop.permute.xlu0 %741
      %744 = vset.pattern.permute.xlu0 1
      %745 = vperm.xlu0 %744, %v542
      %v746 = vpop.permute.xlu0 %745
      %748 = vset.pattern.permute.xlu0 1
      %749 = vperm.xlu0 %748, %v543
      %v750 = vpop.permute.xlu0 %749
      %v752 = vperm.slane %v544, 1
      %v753 = vadd.f32 %v738, %v752
      %v754 = vadd.f32 %v742, %v752
      %v755 = vadd.f32 %v746, %v752
      %v756 = vadd.f32 %v750, %v752
      %v757 = vmul.f32 %v753, 0.2
      %v758 = vmul.f32 %v754, 0.2
      %v759 = vmul.f32 %v755, 0.2
      %v760 = vmul.f32 %v756, 0.2
      %v761 = vmax.f32 %v753, %v757
      %v762 = vmax.f32 %v754, %v758
      %v763 = vmax.f32 %v755, %v759
      %v764 = vmax.f32 %v756, %v760
      %v765 = vadd.f32 %v761, %v553
      %v766 = vadd.f32 %v762, %v554
      %v767 = vadd.f32 %v763, %v555
      %v768 = vadd.f32 %v764, %v556
      %v769 = vsel %vm594, %v765, -inf
      %770 = vmax.xlane.f32.xlu0 %v769
      %v771 = vpop.xlane.xlu0 %770
      %v772 = vsel %vm594, %v766, -inf
      %773 = vmax.xlane.f32.xlu0 %v772
      %v774 = vpop.xlane.xlu0 %773
      %v775 = vsel %vm594, %v767, -inf
      %776 = vmax.xlane.f32.xlu0 %v775
      %v777 = vpop.xlane.xlu0 %776
      %v778 = vsel %vm594, %v768, -inf
      %779 = vmax.xlane.f32.xlu0 %v778
      %v780 = vpop.xlane.xlu0 %779
      %v781 = vsub.f32 %v765, %v771
      %v782 = vsub.f32 %v766, %v774
      %v783 = vsub.f32 %v767, %v777
      %v784 = vsub.f32 %v768, %v780
      %v785 = vmul.f32 %v781, 1.442695
      %v786 = vpow.pop %v785
      %v787 = vmul.f32 %v782, 1.442695
      %v788 = vpow.pop %v787
      %v789 = vmul.f32 %v783, 1.442695
      %v790 = vpow.pop %v789
      %v791 = vmul.f32 %v784, 1.442695
      %v792 = vpow.pop %v791
      %v793 = vsel %vm594, %v786, 0.0
      %794 = vadd.xlane.f32.xlu0 %v793
      %v795 = vpop.xlane.xlu0 %794
      %v796 = vsel %vm594, %v788, 0.0
      %797 = vadd.xlane.f32.xlu0 %v796
      %v798 = vpop.xlane.xlu0 %797
      %v799 = vsel %vm594, %v790, 0.0
      %800 = vadd.xlane.f32.xlu0 %v799
      %v801 = vpop.xlane.xlu0 %800
      %v802 = vsel %vm594, %v792, 0.0
      %803 = vadd.xlane.f32.xlu0 %v802
      %v804 = vpop.xlane.xlu0 %803
      %813 = vrot.lane.b32.xlu0 %v531, 120
      %v814 = vpop.permute.xlu0 %813
      %815 = vrot.lane.b32.xlu0 %v532, 120
      %v816 = vpop.permute.xlu0 %815
      %817 = vrot.lane.b32.xlu0 %v533, 120
      %v818 = vpop.permute.xlu0 %817
      %819 = vrot.lane.b32.xlu0 %v534, 120
      %v820 = vpop.permute.xlu0 %819
      %821 = vrot.lane.b32.xlu0 %v535, 120
      %v822 = vpop.permute.xlu0 %821
      %823 = vrot.lane.b32.xlu0 %v536, 120
      %v824 = vpop.permute.xlu0 %823
      %825 = vrot.lane.b32.xlu0 %v537, 120
      %v826 = vpop.permute.xlu0 %825
      %827 = vrot.lane.b32.xlu0 %v538, 120
      %v828 = vpop.permute.xlu0 %827
      %v838 = vsel %vm594, %v786, 0
      %v841 = vsel %vm594, %v788, 0
      %v844 = vsel %vm594, %v790, 0
      %v847 = vsel %vm594, %v792, 0
      %849 = vmatpush.msra.mxu0 0.0
      %850 = vmatpush.msra.mxu0 0.0
      %851 = vmatpush.msra.mxu0 0.0
      %852 = vmatpush.msra.mxu0 0.0
      %853 = vmatpush.msra.mxu0 0.0
      %854 = vmatpush.msra.mxu0 0.0
      %855 = vmatpush.msra.mxu0 0.0
      %856 = vmatpush.msra.mxu0 0.0
      %857 = vmatpush.msra.mxu0 %v828
      %858 = vmatpush.msra.mxu0 %v826
      %859 = vmatpush.msra.mxu0 %v824
      %860 = vmatpush.msra.mxu0 %v822
      %861 = vmatpush.msra.mxu0 %v820
      %862 = vmatpush.msra.mxu0 %v818
      %863 = vmatpush.msra.mxu0 %v816
      %864 = vmatpush.msra.mxu0 %v814
      %865 = vmatmul.f32.gmra.mxu0 %v838
      %v866 = vpop.f32.mrf.mxu0
      %v867 = vadd.f32 0.0, %v866
      %868 = vmatmul.f32.gmra.mxu0 %v841
      %v869 = vpop.f32.mrf.mxu0
      %v870 = vadd.f32 0.0, %v869
      %871 = vmatmul.f32.gmra.mxu0 %v844
      %v872 = vpop.f32.mrf.mxu0
      %v873 = vadd.f32 0.0, %v872
      %874 = vmatmul.f32.gmra.mxu0 %v847
      %v875 = vpop.f32.mrf.mxu0
      %v876 = vadd.f32 0.0, %v875
      %877 = vdwg.mxu0
      %v878 = vrcp.pop %v795
      %v879 = vmul.f32 %v795, %v878
      %v880 = vsub.f32 1.0, %v879
      %v881 = vmul.f32 %v878, %v880
      %v882 = vadd.f32 %v878, %v881
      %vm883 = vweird.f32 %v795
      %vm884 = vweird.f32 %v878
      %vm885 = vmor %vm883, %vm884
      %v886 = vsel %vm885, %v878, %v882
      %v887 = vand.u32 2147483647, %v795
      %vm888 = vcmp.eq.f32.partialorder %v887, 8.507059e+37
      %v889 = vand.u32 %v795, 2147483648
      %v890 = vor.u32 1.1754944e-38, %v889
      %v891 = vsel %vm888, %v890, %v886
      %v892 = vmul.f32 1.0, %v891
      %v893 = vrcp.pop %v798
      %v894 = vmul.f32 %v798, %v893
      %v895 = vsub.f32 1.0, %v894
      %v896 = vmul.f32 %v893, %v895
      %v897 = vadd.f32 %v893, %v896
      %vm898 = vweird.f32 %v798
      %vm899 = vweird.f32 %v893
      %vm900 = vmor %vm898, %vm899
      %v901 = vsel %vm900, %v893, %v897
      %v902 = vand.u32 2147483647, %v798
      %vm903 = vcmp.eq.f32.partialorder %v902, 8.507059e+37
      %v904 = vand.u32 %v798, 2147483648
      %v905 = vor.u32 1.1754944e-38, %v904
      %v906 = vsel %vm903, %v905, %v901
      %v907 = vmul.f32 1.0, %v906
      %v908 = vrcp.pop %v801
      %v909 = vmul.f32 %v801, %v908
      %v910 = vsub.f32 1.0, %v909
      %v911 = vmul.f32 %v908, %v910
      %v912 = vadd.f32 %v908, %v911
      %vm913 = vweird.f32 %v801
      %vm914 = vweird.f32 %v908
      %vm915 = vmor %vm913, %vm914
      %v916 = vsel %vm915, %v908, %v912
      %v917 = vand.u32 2147483647, %v801
      %vm918 = vcmp.eq.f32.partialorder %v917, 8.507059e+37
      %v919 = vand.u32 %v801, 2147483648
      %v920 = vor.u32 1.1754944e-38, %v919
      %v921 = vsel %vm918, %v920, %v916
      %v922 = vmul.f32 1.0, %v921
      %v923 = vrcp.pop %v804
      %v924 = vmul.f32 %v804, %v923
      %v925 = vsub.f32 1.0, %v924
      %v926 = vmul.f32 %v923, %v925
      %v927 = vadd.f32 %v923, %v926
      %vm928 = vweird.f32 %v804
      %vm929 = vweird.f32 %v923
      %vm930 = vmor %vm928, %vm929
      %v931 = vsel %vm930, %v923, %v927
      %v932 = vand.u32 2147483647, %v804
      %vm933 = vcmp.eq.f32.partialorder %v932, 8.507059e+37
      %v934 = vand.u32 %v804, 2147483648
      %v935 = vor.u32 1.1754944e-38, %v934
      %v936 = vsel %vm933, %v935, %v931
      %v937 = vmul.f32 1.0, %v936
      %v938 = vmul.f32 %v867, %v892
      %v939 = vmul.f32 %v870, %v907
      %v940 = vmul.f32 %v873, %v922
      %v941 = vmul.f32 %v876, %v937
      %942 = vset.pattern.permute.xlu0 2
      %943 = vperm.xlu0 %942, %v540
      %v944 = vpop.permute.xlu0 %943
      %946 = vset.pattern.permute.xlu0 2
      %947 = vperm.xlu0 %946, %v541
      %v948 = vpop.permute.xlu0 %947
      %950 = vset.pattern.permute.xlu0 2
      %951 = vperm.xlu0 %950, %v542
      %v952 = vpop.permute.xlu0 %951
      %954 = vset.pattern.permute.xlu0 2
      %955 = vperm.xlu0 %954, %v543
      %v956 = vpop.permute.xlu0 %955
      %v958 = vperm.slane %v544, 2
      %v959 = vadd.f32 %v944, %v958
      %v960 = vadd.f32 %v948, %v958
      %v961 = vadd.f32 %v952, %v958
      %v962 = vadd.f32 %v956, %v958
      %v963 = vmul.f32 %v959, 0.2
      %v964 = vmul.f32 %v960, 0.2
      %v965 = vmul.f32 %v961, 0.2
      %v966 = vmul.f32 %v962, 0.2
      %v967 = vmax.f32 %v959, %v963
      %v968 = vmax.f32 %v960, %v964
      %v969 = vmax.f32 %v961, %v965
      %v970 = vmax.f32 %v962, %v966
      %v971 = vadd.f32 %v967, %v553
      %v972 = vadd.f32 %v968, %v554
      %v973 = vadd.f32 %v969, %v555
      %v974 = vadd.f32 %v970, %v556
      %v975 = vsel %vm594, %v971, -inf
      %976 = vmax.xlane.f32.xlu0 %v975
      %v977 = vpop.xlane.xlu0 %976
      %v978 = vsel %vm594, %v972, -inf
      %979 = vmax.xlane.f32.xlu0 %v978
      %v980 = vpop.xlane.xlu0 %979
      %v981 = vsel %vm594, %v973, -inf
      %982 = vmax.xlane.f32.xlu0 %v981
      %v983 = vpop.xlane.xlu0 %982
      %v984 = vsel %vm594, %v974, -inf
      %985 = vmax.xlane.f32.xlu0 %v984
      %v986 = vpop.xlane.xlu0 %985
      %v987 = vsub.f32 %v971, %v977
      %v988 = vsub.f32 %v972, %v980
      %v989 = vsub.f32 %v973, %v983
      %v990 = vsub.f32 %v974, %v986
      %v991 = vmul.f32 %v987, 1.442695
      %v992 = vpow.pop %v991
      %v993 = vmul.f32 %v988, 1.442695
      %v994 = vpow.pop %v993
      %v995 = vmul.f32 %v989, 1.442695
      %v996 = vpow.pop %v995
      %v997 = vmul.f32 %v990, 1.442695
      %v998 = vpow.pop %v997
      %v999 = vsel %vm594, %v992, 0.0
      %1000 = vadd.xlane.f32.xlu0 %v999
      %v1001 = vpop.xlane.xlu0 %1000
      %v1002 = vsel %vm594, %v994, 0.0
      %1003 = vadd.xlane.f32.xlu0 %v1002
      %v1004 = vpop.xlane.xlu0 %1003
      %v1005 = vsel %vm594, %v996, 0.0
      %1006 = vadd.xlane.f32.xlu0 %v1005
      %v1007 = vpop.xlane.xlu0 %1006
      %v1008 = vsel %vm594, %v998, 0.0
      %1009 = vadd.xlane.f32.xlu0 %v1008
      %v1010 = vpop.xlane.xlu0 %1009
      %1011 = vrot.lane.b32.xlu0 %v531, 112
      %v1012 = vpop.permute.xlu0 %1011
      %1013 = vrot.lane.b32.xlu0 %v532, 112
      %v1014 = vpop.permute.xlu0 %1013
      %1015 = vrot.lane.b32.xlu0 %v533, 112
      %v1016 = vpop.permute.xlu0 %1015
      %1017 = vrot.lane.b32.xlu0 %v534, 112
      %v1018 = vpop.permute.xlu0 %1017
      %1019 = vrot.lane.b32.xlu0 %v535, 112
      %v1020 = vpop.permute.xlu0 %1019
      %1021 = vrot.lane.b32.xlu0 %v536, 112
      %v1022 = vpop.permute.xlu0 %1021
      %1023 = vrot.lane.b32.xlu0 %v537, 112
      %v1024 = vpop.permute.xlu0 %1023
      %1025 = vrot.lane.b32.xlu0 %v538, 112
      %v1026 = vpop.permute.xlu0 %1025
      %v1036 = vsel %vm594, %v992, 0
      %v1039 = vsel %vm594, %v994, 0
      %v1042 = vsel %vm594, %v996, 0
      %v1045 = vsel %vm594, %v998, 0
      %1047 = vmatpush.msra.mxu0 0.0
      %1048 = vmatpush.msra.mxu0 0.0
      %1049 = vmatpush.msra.mxu0 0.0
      %1050 = vmatpush.msra.mxu0 0.0
      %1051 = vmatpush.msra.mxu0 0.0
      %1052 = vmatpush.msra.mxu0 0.0
      %1053 = vmatpush.msra.mxu0 0.0
      %1054 = vmatpush.msra.mxu0 0.0
      %1055 = vmatpush.msra.mxu0 %v1026
      %1056 = vmatpush.msra.mxu0 %v1024
      %1057 = vmatpush.msra.mxu0 %v1022
      %1058 = vmatpush.msra.mxu0 %v1020
      %1059 = vmatpush.msra.mxu0 %v1018
      %1060 = vmatpush.msra.mxu0 %v1016
      %1061 = vmatpush.msra.mxu0 %v1014
      %1062 = vmatpush.msra.mxu0 %v1012
      %1063 = vmatmul.f32.gmra.mxu0 %v1036
      %v1064 = vpop.f32.mrf.mxu0
      %v1065 = vadd.f32 0.0, %v1064
      %1066 = vmatmul.f32.gmra.mxu0 %v1039
      %v1067 = vpop.f32.mrf.mxu0
      %v1068 = vadd.f32 0.0, %v1067
      %1069 = vmatmul.f32.gmra.mxu0 %v1042
      %v1070 = vpop.f32.mrf.mxu0
      %v1071 = vadd.f32 0.0, %v1070
      %1072 = vmatmul.f32.gmra.mxu0 %v1045
      %v1073 = vpop.f32.mrf.mxu0
      %v1074 = vadd.f32 0.0, %v1073
      %1075 = vdwg.mxu0
      %v1076 = vrcp.pop %v1001
      %v1077 = vmul.f32 %v1001, %v1076
      %v1078 = vsub.f32 1.0, %v1077
      %v1079 = vmul.f32 %v1076, %v1078
      %v1080 = vadd.f32 %v1076, %v1079
      %vm1081 = vweird.f32 %v1001
      %vm1082 = vweird.f32 %v1076
      %vm1083 = vmor %vm1081, %vm1082
      %v1084 = vsel %vm1083, %v1076, %v1080
      %v1085 = vand.u32 2147483647, %v1001
      %vm1086 = vcmp.eq.f32.partialorder %v1085, 8.507059e+37
      %v1087 = vand.u32 %v1001, 2147483648
      %v1088 = vor.u32 1.1754944e-38, %v1087
      %v1089 = vsel %vm1086, %v1088, %v1084
      %v1090 = vmul.f32 1.0, %v1089
      %v1091 = vrcp.pop %v1004
      %v1092 = vmul.f32 %v1004, %v1091
      %v1093 = vsub.f32 1.0, %v1092
      %v1094 = vmul.f32 %v1091, %v1093
      %v1095 = vadd.f32 %v1091, %v1094
      %vm1096 = vweird.f32 %v1004
      %vm1097 = vweird.f32 %v1091
      %vm1098 = vmor %vm1096, %vm1097
      %v1099 = vsel %vm1098, %v1091, %v1095
      %v1100 = vand.u32 2147483647, %v1004
      %vm1101 = vcmp.eq.f32.partialorder %v1100, 8.507059e+37
      %v1102 = vand.u32 %v1004, 2147483648
      %v1103 = vor.u32 1.1754944e-38, %v1102
      %v1104 = vsel %vm1101, %v1103, %v1099
      %v1105 = vmul.f32 1.0, %v1104
      %v1106 = vrcp.pop %v1007
      %v1107 = vmul.f32 %v1007, %v1106
      %v1108 = vsub.f32 1.0, %v1107
      %v1109 = vmul.f32 %v1106, %v1108
      %v1110 = vadd.f32 %v1106, %v1109
      %vm1111 = vweird.f32 %v1007
      %vm1112 = vweird.f32 %v1106
      %vm1113 = vmor %vm1111, %vm1112
      %v1114 = vsel %vm1113, %v1106, %v1110
      %v1115 = vand.u32 2147483647, %v1007
      %vm1116 = vcmp.eq.f32.partialorder %v1115, 8.507059e+37
      %v1117 = vand.u32 %v1007, 2147483648
      %v1118 = vor.u32 1.1754944e-38, %v1117
      %v1119 = vsel %vm1116, %v1118, %v1114
      %v1120 = vmul.f32 1.0, %v1119
      %v1121 = vrcp.pop %v1010
      %v1122 = vmul.f32 %v1010, %v1121
      %v1123 = vsub.f32 1.0, %v1122
      %v1124 = vmul.f32 %v1121, %v1123
      %v1125 = vadd.f32 %v1121, %v1124
      %vm1126 = vweird.f32 %v1010
      %vm1127 = vweird.f32 %v1121
      %vm1128 = vmor %vm1126, %vm1127
      %v1129 = vsel %vm1128, %v1121, %v1125
      %v1130 = vand.u32 2147483647, %v1010
      %vm1131 = vcmp.eq.f32.partialorder %v1130, 8.507059e+37
      %v1132 = vand.u32 %v1010, 2147483648
      %v1133 = vor.u32 1.1754944e-38, %v1132
      %v1134 = vsel %vm1131, %v1133, %v1129
      %v1135 = vmul.f32 1.0, %v1134
      %v1136 = vmul.f32 %v1065, %v1090
      %v1137 = vmul.f32 %v1068, %v1105
      %v1138 = vmul.f32 %v1071, %v1120
      %v1139 = vmul.f32 %v1074, %v1135
      %1140 = vset.pattern.permute.xlu0 3
      %1141 = vperm.xlu0 %1140, %v540
      %v1142 = vpop.permute.xlu0 %1141
      %1144 = vset.pattern.permute.xlu0 3
      %1145 = vperm.xlu0 %1144, %v541
      %v1146 = vpop.permute.xlu0 %1145
      %1148 = vset.pattern.permute.xlu0 3
      %1149 = vperm.xlu0 %1148, %v542
      %v1150 = vpop.permute.xlu0 %1149
      %1152 = vset.pattern.permute.xlu0 3
      %1153 = vperm.xlu0 %1152, %v543
      %v1154 = vpop.permute.xlu0 %1153
      %v1156 = vperm.slane %v544, 3
      %v1157 = vadd.f32 %v1142, %v1156
      %v1158 = vadd.f32 %v1146, %v1156
      %v1159 = vadd.f32 %v1150, %v1156
      %v1160 = vadd.f32 %v1154, %v1156
      %v1161 = vmul.f32 %v1157, 0.2
      %v1162 = vmul.f32 %v1158, 0.2
      %v1163 = vmul.f32 %v1159, 0.2
      %v1164 = vmul.f32 %v1160, 0.2
      %v1165 = vmax.f32 %v1157, %v1161
      %v1166 = vmax.f32 %v1158, %v1162
      %v1167 = vmax.f32 %v1159, %v1163
      %v1168 = vmax.f32 %v1160, %v1164
      %v1169 = vadd.f32 %v1165, %v553
      %v1170 = vadd.f32 %v1166, %v554
      %v1171 = vadd.f32 %v1167, %v555
      %v1172 = vadd.f32 %v1168, %v556
      %v1173 = vsel %vm594, %v1169, -inf
      %1174 = vmax.xlane.f32.xlu0 %v1173
      %v1175 = vpop.xlane.xlu0 %1174
      %v1176 = vsel %vm594, %v1170, -inf
      %1177 = vmax.xlane.f32.xlu0 %v1176
      %v1178 = vpop.xlane.xlu0 %1177
      %v1179 = vsel %vm594, %v1171, -inf
      %1180 = vmax.xlane.f32.xlu0 %v1179
      %v1181 = vpop.xlane.xlu0 %1180
      %v1182 = vsel %vm594, %v1172, -inf
      %1183 = vmax.xlane.f32.xlu0 %v1182
      %v1184 = vpop.xlane.xlu0 %1183
      %v1185 = vsub.f32 %v1169, %v1175
      %v1186 = vsub.f32 %v1170, %v1178
      %v1187 = vsub.f32 %v1171, %v1181
      %v1188 = vsub.f32 %v1172, %v1184
      %v1189 = vmul.f32 %v1185, 1.442695
      %v1190 = vpow.pop %v1189
      %v1191 = vmul.f32 %v1186, 1.442695
      %v1192 = vpow.pop %v1191
      %v1193 = vmul.f32 %v1187, 1.442695
      %v1194 = vpow.pop %v1193
      %v1195 = vmul.f32 %v1188, 1.442695
      %v1196 = vpow.pop %v1195
      %v1197 = vsel %vm594, %v1190, 0.0
      %1198 = vadd.xlane.f32.xlu0 %v1197
      %v1199 = vpop.xlane.xlu0 %1198
      %v1200 = vsel %vm594, %v1192, 0.0
      %1201 = vadd.xlane.f32.xlu0 %v1200
      %v1202 = vpop.xlane.xlu0 %1201
      %v1203 = vsel %vm594, %v1194, 0.0
      %1204 = vadd.xlane.f32.xlu0 %v1203
      %v1205 = vpop.xlane.xlu0 %1204
      %v1206 = vsel %vm594, %v1196, 0.0
      %1207 = vadd.xlane.f32.xlu0 %v1206
      %v1208 = vpop.xlane.xlu0 %1207
      %1209 = vrot.lane.b32.xlu0 %v531, 104
      %v1210 = vpop.permute.xlu0 %1209
      %1211 = vrot.lane.b32.xlu0 %v532, 104
      %v1212 = vpop.permute.xlu0 %1211
      %1213 = vrot.lane.b32.xlu0 %v533, 104
      %v1214 = vpop.permute.xlu0 %1213
      %1215 = vrot.lane.b32.xlu0 %v534, 104
      %v1216 = vpop.permute.xlu0 %1215
      %1217 = vrot.lane.b32.xlu0 %v535, 104
      %v1218 = vpop.permute.xlu0 %1217
      %1219 = vrot.lane.b32.xlu0 %v536, 104
      %v1220 = vpop.permute.xlu0 %1219
      %1221 = vrot.lane.b32.xlu0 %v537, 104
      %v1222 = vpop.permute.xlu0 %1221
      %1223 = vrot.lane.b32.xlu0 %v538, 104
      %v1224 = vpop.permute.xlu0 %1223
      %v1234 = vsel %vm594, %v1190, 0
      %v1237 = vsel %vm594, %v1192, 0
      %v1240 = vsel %vm594, %v1194, 0
      %v1243 = vsel %vm594, %v1196, 0
      %1245 = vmatpush.msra.mxu0 0.0
      %1246 = vmatpush.msra.mxu0 0.0
      %1247 = vmatpush.msra.mxu0 0.0
      %1248 = vmatpush.msra.mxu0 0.0
      %1249 = vmatpush.msra.mxu0 0.0
      %1250 = vmatpush.msra.mxu0 0.0
      %1251 = vmatpush.msra.mxu0 0.0
      %1252 = vmatpush.msra.mxu0 0.0
      %1253 = vmatpush.msra.mxu0 %v1224
      %1254 = vmatpush.msra.mxu0 %v1222
      %1255 = vmatpush.msra.mxu0 %v1220
      %1256 = vmatpush.msra.mxu0 %v1218
      %1257 = vmatpush.msra.mxu0 %v1216
      %1258 = vmatpush.msra.mxu0 %v1214
      %1259 = vmatpush.msra.mxu0 %v1212
      %1260 = vmatpush.msra.mxu0 %v1210
      %1261 = vmatmul.f32.gmra.mxu0 %v1234
      %v1262 = vpop.f32.mrf.mxu0
      %v1263 = vadd.f32 0.0, %v1262
      %1264 = vmatmul.f32.gmra.mxu0 %v1237
      %v1265 = vpop.f32.mrf.mxu0
      %v1266 = vadd.f32 0.0, %v1265
      %1267 = vmatmul.f32.gmra.mxu0 %v1240
      %v1268 = vpop.f32.mrf.mxu0
      %v1269 = vadd.f32 0.0, %v1268
      %1270 = vmatmul.f32.gmra.mxu0 %v1243
      %v1271 = vpop.f32.mrf.mxu0
      %v1272 = vadd.f32 0.0, %v1271
      %1273 = vdwg.mxu0
      %v1274 = vrcp.pop %v1199
      %v1275 = vmul.f32 %v1199, %v1274
      %v1276 = vsub.f32 1.0, %v1275
      %v1277 = vmul.f32 %v1274, %v1276
      %v1278 = vadd.f32 %v1274, %v1277
      %vm1279 = vweird.f32 %v1199
      %vm1280 = vweird.f32 %v1274
      %vm1281 = vmor %vm1279, %vm1280
      %v1282 = vsel %vm1281, %v1274, %v1278
      %v1283 = vand.u32 2147483647, %v1199
      %vm1284 = vcmp.eq.f32.partialorder %v1283, 8.507059e+37
      %v1285 = vand.u32 %v1199, 2147483648
      %v1286 = vor.u32 1.1754944e-38, %v1285
      %v1287 = vsel %vm1284, %v1286, %v1282
      %v1288 = vmul.f32 1.0, %v1287
      %v1289 = vrcp.pop %v1202
      %v1290 = vmul.f32 %v1202, %v1289
      %v1291 = vsub.f32 1.0, %v1290
      %v1292 = vmul.f32 %v1289, %v1291
      %v1293 = vadd.f32 %v1289, %v1292
      %vm1294 = vweird.f32 %v1202
      %vm1295 = vweird.f32 %v1289
      %vm1296 = vmor %vm1294, %vm1295
      %v1297 = vsel %vm1296, %v1289, %v1293
      %v1298 = vand.u32 2147483647, %v1202
      %vm1299 = vcmp.eq.f32.partialorder %v1298, 8.507059e+37
      %v1300 = vand.u32 %v1202, 2147483648
      %v1301 = vor.u32 1.1754944e-38, %v1300
      %v1302 = vsel %vm1299, %v1301, %v1297
      %v1303 = vmul.f32 1.0, %v1302
      %v1304 = vrcp.pop %v1205
      %v1305 = vmul.f32 %v1205, %v1304
      %v1306 = vsub.f32 1.0, %v1305
      %v1307 = vmul.f32 %v1304, %v1306
      %v1308 = vadd.f32 %v1304, %v1307
      %vm1309 = vweird.f32 %v1205
      %vm1310 = vweird.f32 %v1304
      %vm1311 = vmor %vm1309, %vm1310
      %v1312 = vsel %vm1311, %v1304, %v1308
      %v1313 = vand.u32 2147483647, %v1205
      %vm1314 = vcmp.eq.f32.partialorder %v1313, 8.507059e+37
      %v1315 = vand.u32 %v1205, 2147483648
      %v1316 = vor.u32 1.1754944e-38, %v1315
      %v1317 = vsel %vm1314, %v1316, %v1312
      %v1318 = vmul.f32 1.0, %v1317
      %v1319 = vrcp.pop %v1208
      %v1320 = vmul.f32 %v1208, %v1319
      %v1321 = vsub.f32 1.0, %v1320
      %v1322 = vmul.f32 %v1319, %v1321
      %v1323 = vadd.f32 %v1319, %v1322
      %vm1324 = vweird.f32 %v1208
      %vm1325 = vweird.f32 %v1319
      %vm1326 = vmor %vm1324, %vm1325
      %v1327 = vsel %vm1326, %v1319, %v1323
      %v1328 = vand.u32 2147483647, %v1208
      %vm1329 = vcmp.eq.f32.partialorder %v1328, 8.507059e+37
      %v1330 = vand.u32 %v1208, 2147483648
      %v1331 = vor.u32 1.1754944e-38, %v1330
      %v1332 = vsel %vm1329, %v1331, %v1327
      %v1333 = vmul.f32 1.0, %v1332
      %v1334 = vmul.f32 %v1263, %v1288
      %v1335 = vmul.f32 %v1266, %v1303
      %v1336 = vmul.f32 %v1269, %v1318
      %v1337 = vmul.f32 %v1272, %v1333
      %1342 = vrot.lane.b32.xlu0 %v938, 8
      %v1343 = vpop.permute.xlu0 %1342
      %1344 = vrot.lane.b32.xlu0 %v939, 8
      %v1345 = vpop.permute.xlu0 %1344
      %1346 = vrot.lane.b32.xlu0 %v940, 8
      %v1347 = vpop.permute.xlu0 %1346
      %1348 = vrot.lane.b32.xlu0 %v941, 8
      %v1349 = vpop.permute.xlu0 %1348
      %1358 = vrot.lane.b32.xlu0 %v1136, 16
      %v1359 = vpop.permute.xlu0 %1358
      %1360 = vrot.lane.b32.xlu0 %v1137, 16
      %v1361 = vpop.permute.xlu0 %1360
      %1362 = vrot.lane.b32.xlu0 %v1138, 16
      %v1363 = vpop.permute.xlu0 %1362
      %1364 = vrot.lane.b32.xlu0 %v1139, 16
      %v1365 = vpop.permute.xlu0 %1364
      %1374 = vrot.lane.b32.xlu0 %v1334, 24
      %v1375 = vpop.permute.xlu0 %1374
      %1376 = vrot.lane.b32.xlu0 %v1335, 24
      %v1377 = vpop.permute.xlu0 %1376
      %1378 = vrot.lane.b32.xlu0 %v1336, 24
      %v1379 = vpop.permute.xlu0 %1378
      %1380 = vrot.lane.b32.xlu0 %v1337, 24
      %v1381 = vpop.permute.xlu0 %1380
      %vm1386 = vcmask 64512
      %v1387 = vsel %vm1386, %v732, %v1343
      %v1388 = vsel %vm1386, %v733, %v1345
      %v1389 = vsel %vm1386, %v734, %v1347
      %v1390 = vsel %vm1386, %v735, %v1349
      %vm1391 = vcmask 130048
      %v1392 = vsel %vm1391, %v1387, %v1359
      %v1393 = vsel %vm1391, %v1388, %v1361
      %v1394 = vsel %vm1391, %v1389, %v1363
      %v1395 = vsel %vm1391, %v1390, %v1365
      %vm1396 = vcmask 195584
      %v1397 = vsel %vm1396, %v1392, %v1375
      %v1398 = vsel %vm1396, %v1393, %v1377
      %v1399 = vsel %vm1396, %v1394, %v1379
      %v1400 = vsel %vm1396, %v1395, %v1381
      %vm1401 = vcmask 261120
      %1402 = vst.msk [vmem:[%s282] sm:$0xff] %vm1401, %v1397
      %1403 = vst.msk [vmem:[%s282 + $0x8] sm:$0xff] %vm1401, %v1398
      %1404 = vst.msk [vmem:[%s282 + $0x10] sm:$0xff] %vm1401, %v1399
      %1405 = vst.msk [vmem:[%s282 + $0x18] sm:$0xff] %vm1401, %v1400
      %s1406 = smul.u32 4, %s21
      %p1407 = scmp.lt.s32.totalorder %s20, 1
      %s1408 = scalar_select %p1407, %s20, 1
      %p1409 = scmp.lt.s32.totalorder %s1406, 7
      %s1410 = scalar_select %p1409, %s1406, 7
      %s1411 = smul.addr %s1408, 8
      %s1412 = sadd.s32 %s1410, %s1411
      %s1413 = smul.addr %s1412, 8
      %s1414 = scalar_lea.vmem %s5, %s1413
      // Predicated region
      $region45: #{tpu_custom_call.1} parent=39 // pred_check
        %p1415 = pneg %p165
      $region46: #{tpu_custom_call.1} parent=39 // pred_check_branch
        %1417 = sbr.rel (%p1415) target = $region48
      $region47: #{tpu_custom_call.1} parent=39 // pred_region
        %s1418 = smul.u32 4, %s21
      $region48: #{tpu_custom_call.1} parent=39 // pred_fallthru
        _
    $region40: #{tpu_custom_call.1} parent=5 // pred_fallthru
      _
    %p1419 = scmp.le.s32.totalorder 2, %s11
    // Predicated region
    $region49: #{tpu_custom_call.1} parent=5 // pred_check
      %p1420 = pneg %p1419
    $region50: #{tpu_custom_call.1} parent=5 // pred_check_branch
      %1422 = sbr.rel (%p1420) target = $region52
    $region51: #{tpu_custom_call.1} parent=5 // pred_region
      %s1423 = ssub.s32 %s11, 2
      // Predicated region
      $region53: #{tpu_custom_call.1} parent=51 // pred_check
        %p1424 = pneg %p171
      $region54: #{tpu_custom_call.1} parent=51 // pred_check_branch
        %1426 = sbr.rel (%p1424) target = $region56
      $region55: #{tpu_custom_call.1} parent=51 // pred_region
        %s1427 = smul.u32 4, %s23
        %p1428 = scmp.lt.s32.totalorder %s22, 1
        %s1429 = scalar_select %p1428, %s22, 1
        %p1430 = scmp.lt.s32.totalorder %s1427, 7
        %s1431 = scalar_select %p1430, %s1427, 7
        %s1432 = smul.addr %s1429, 8
        %s1433 = sadd.s32 %s1431, %s1432
        %s1434 = smul.addr %s1433, 8
        %s1435 = scalar_lea.vmem %s5, %s1434
      $region56: #{tpu_custom_call.1} parent=51 // pred_fallthru
        _
    $region52: #{tpu_custom_call.1} parent=5 // pred_fallthru
      _
  $region6: #{tpu_custom_call.1} parent=0 // loop_footer
    %s15 = sadd.s32 1, %s11
  $region7: #{tpu_custom_call.1} parent=0 // loop_footer_branch
    %10 = sbr.rel target = $region3
  $region8: #{tpu_custom_call.1} parent=0 // loop_exit
    _

</llo_original>
